<compile_context>
chip_gen: v6e
topology: v6e:2x2x1
jax: 0.10.0
libtpu: 0.0.40
codegen_flags: <defaults>
</compile_context>

<pallas_src>
import jax
import jax.numpy as jnp
from jax.experimental import pallas as pl
from jax.experimental.pallas import tpu as pltpu


# ---------------------------------------------------------------------------
# Kernel
# ---------------------------------------------------------------------------
def inter_modal_kernel(
    x_ref,                       # [BT, D1+D2]   concatenated modalities (bf16)
    encw_ref, encb_ref,          # [D1+D2, E1+E2] block-diag encoder weight, [1, E1+E2] bias
    projw_ref, projb_ref,        # [E1+E2, HID] stacked projector weight, [1, HID] bias (p1b+p2b)
    h1w_ref, h1b_ref,            # [HID, HID] head linear 1 with BN folded in, [1, HID]
    h2w_ref, h2b_ref,            # [HID, OUT_PAD] lane-dense-padded head linear 2, [1, OUT_PAD]
    out_ref,                     # [BT, OUT_PAD] f32
):
    f32 = jnp.float32
    mxu_dt = encw_ref.dtype      # matmul operand dtype (bf16); epilogues stay f32

    # --- fused encoders: one MXU pass over the block-diagonal weight, then bias+ReLU ---
    enc = jnp.dot(x_ref[...], encw_ref[...], preferred_element_type=f32) + encb_ref[...]
    enc = jnp.maximum(enc, 0.0)

    # --- fused projectors + sum fusion: one [BT, E1+E2] x [E1+E2, HID] matmul ---
    fused = jnp.dot(enc.astype(mxu_dt), projw_ref[...],
                    preferred_element_type=f32) + projb_ref[...]

    # --- head: Linear (eval-BatchNorm folded into weights) -> ReLU ---
    y = jnp.dot(fused.astype(mxu_dt), h1w_ref[...],
                preferred_element_type=f32) + h1b_ref[...]
    y = jnp.maximum(y, 0.0)
    # Dropout: eval-mode identity.
    # TODO(synk): training-mode dropout would need pltpu.prng_seed/prng_random_bits.

    # --- head linear 2, padded to a lane-dense 128-wide output (extra cols are zero) ---
    out = jnp.dot(y.astype(mxu_dt), h2w_ref[...],
                  preferred_element_type=f32) + h2b_ref[...]
    out_ref[...] = out.astype(out_ref.dtype)


# ---------------------------------------------------------------------------
# Wrapper-side parameter preparation (constant folding, fusion, padding, cast)
# ---------------------------------------------------------------------------
def _prepare_params(params, *, bn_eps=1e-5, out_pad=128, mxu_dtype=jnp.bfloat16):
    (e1w, e1b, e2w, e2b, p1w, p1b, p2w, p2b,
     h1w, h1b, bng, bnb, bnm, bnv, h2w, h2b) = params
    D1, E1 = e1w.shape
    D2, E2 = e2w.shape
    HID = p1w.shape[1]
    n_out = h2w.shape[1]

    # Block-diagonal fused encoder weight: [x1|x2] @ [[e1w,0],[0,e2w]] == [x1@e1w | x2@e2w]
    encw = jnp.zeros((D1 + D2, E1 + E2), jnp.float32)
    encw = encw.at[:D1, :E1].set(e1w).at[D1:, E1:].set(e2w)
    encb = jnp.concatenate([e1b, e2b], axis=1)                      # [1, E1+E2]

    # Fused projector + sum fusion: [enc1|enc2] @ [p1w; p2w] == enc1@p1w + enc2@p2w
    projw = jnp.concatenate([p1w, p2w], axis=0)                     # [E1+E2, HID]
    projb = p1b + p2b                                               # [1, HID]

    # Fold eval-mode BatchNorm1d (running stats) into head linear 1.
    scale = bng * jax.lax.rsqrt(bnv + bn_eps)                       # [1, HID]
    h1w_f = h1w * scale                                             # per-output-column scale
    h1b_f = (h1b - bnm) * scale + bnb

    # Pad final linear to lane-dense width; extra columns are zero.
    h2w_p = jnp.zeros((HID, out_pad), jnp.float32).at[:, :n_out].set(h2w)
    h2b_p = jnp.zeros((1, out_pad), jnp.float32).at[:, :n_out].set(h2b)

    cast = lambda w: w.astype(mxu_dtype)
    return (cast(encw), encb, cast(projw), projb,
            cast(h1w_f), h1b_f, cast(h2w_p), h2b_p, n_out)


def _pick_batch_tile(B):
    # Largest tile (multiple of 8, <= 256) that keeps >= 2 grid steps so the
    # "parallel" batch axis can be sharded across v7x's 2 TensorCores.
    for bt in (256, 128, 64, 32, 16, 8):
        if B % bt == 0 and B // bt >= 2:
            return bt
    for bt in (256, 128, 64, 32, 16, 8):
        if B % bt == 0:
            return bt
    return B


# ---------------------------------------------------------------------------
# Forward
# ---------------------------------------------------------------------------
def inter_modal_forward(x1_nchw, x2, params, *, batch_tile=None,
                        mxu_dtype=jnp.bfloat16):
    B = x1_nchw.shape[0]
    x1 = x1_nchw.reshape(B, -1)                       # torch.flatten(x, 1)
    x = jnp.concatenate([x1, x2], axis=1).astype(mxu_dtype)          # [B, D1+D2]

    (encw, encb, projw, projb, h1w, h1b, h2w, h2b, n_out) = _prepare_params(
        params, mxu_dtype=mxu_dtype)

    DIN = x.shape[1]
    OUT_PAD = h2w.shape[1]
    BT = batch_tile or _pick_batch_tile(B)
    assert B % BT == 0, (B, BT)

    def build_and_run(single_buffer_weights):
        if single_buffer_weights:
            # Grid-invariant weights: single-buffered (no benefit from double-buffering,
            # halves their VMEM footprint).
            def wspec(shape):
                return pl.BlockSpec(shape, lambda i: (0, 0),
                                    pipeline_mode=pl.Buffered(1))
        else:
            def wspec(shape):
                return pl.BlockSpec(shape, lambda i: (0, 0))

        grid_spec = pltpu.PrefetchScalarGridSpec(
            num_scalar_prefetch=0,
            grid=(B // BT,),
            in_specs=[
                pl.BlockSpec((BT, DIN), lambda i: (i, 0)),
                wspec(encw.shape), wspec(encb.shape),
                wspec(projw.shape), wspec(projb.shape),
                wspec(h1w.shape), wspec(h1b.shape),
                wspec(h2w.shape), wspec(h2b.shape),
            ],
            out_specs=pl.BlockSpec((BT, OUT_PAD), lambda i: (i, 0)),
        )
        out = pl.pallas_call(
            inter_modal_kernel,
            out_shape=jax.ShapeDtypeStruct((B, OUT_PAD), jnp.float32),
            grid_spec=grid_spec,
            compiler_params=pltpu.CompilerParams(
                dimension_semantics=("parallel",)),
        )(x, encw, encb, projw, projb, h1w, h1b, h2w, h2b)
        return jax.block_until_ready(out)

    try:
        padded = build_and_run(single_buffer_weights=True)
    except Exception:
        # Fall back to default double-buffered weight blocks if single-buffering
        # is not supported by this JAX/Mosaic version.
        padded = build_and_run(single_buffer_weights=False)

    return padded[:, :n_out]


# ---------------------------------------------------------------------------
# Parameters / references
# ---------------------------------------------------------------------------
def _make_params(key, D1, D2, E1, E2, HID, n_out=2):
    ks = jax.random.split(key, 14)
    s = 0.02
    # Weights stored [in, out] (PyTorch Linear weight [out, in] transposed).
    e1w = s * jax.random.normal(ks[0], (D1, E1), jnp.float32)
    e1b = s * jax.random.normal(ks[1], (1, E1), jnp.float32)
    e2w = s * jax.random.normal(ks[2], (D2, E2), jnp.float32)
    e2b = s * jax.random.normal(ks[3], (1, E2), jnp.float32)
    p1w = s * jax.random.normal(ks[4], (E1, HID), jnp.float32)
    p1b = s * jax.random.normal(ks[5], (1, HID), jnp.float32)
    p2w = s * jax.random.normal(ks[6], (E2, HID), jnp.float32)
    p2b = s * jax.random.normal(ks[7], (1, HID), jnp.float32)
    h1w = s * jax.random.normal(ks[8], (HID, HID), jnp.float32)
    h1b = s * jax.random.normal(ks[9], (1, HID), jnp.float32)
    # Non-trivial eval-mode BatchNorm running stats to exercise the fold.
    bng = 1.0 + 0.1 * jax.random.normal(ks[10], (1, HID), jnp.float32)
    bnb = 0.05 * jax.random.normal(ks[11], (1, HID), jnp.float32)
    bnm = 0.02 * jax.random.normal(ks[12], (1, HID), jnp.float32)
    bnv = 1.0 + 0.1 * jnp.abs(jax.random.normal(ks[13], (1, HID), jnp.float32))
    h2w = s * jax.random.normal(jax.random.fold_in(key, 99), (HID, n_out), jnp.float32)
    h2b = s * jnp.ones((1, n_out), jnp.float32)
    return (e1w, e1b, e2w, e2b, p1w, p1b, p2w, p2b,
            h1w, h1b, bng, bnb, bnm, bnv, h2w, h2b)


def _reference_f32(x1_nchw, x2, params):
    # Pure-f32 PyTorch-semantics reference (eval mode).
    (e1w, e1b, e2w, e2b, p1w, p1b, p2w, p2b,
     h1w, h1b, bng, bnb, bnm, bnv, h2w, h2b) = params
    x1 = x1_nchw.reshape(x1_nchw.shape[0], -1)
    enc1 = jnp.maximum(x1 @ e1w + e1b, 0.0)
    enc2 = jnp.maximum(x2 @ e2w + e2b, 0.0)
    fused = (enc1 @ p1w + p1b) + (enc2 @ p2w + p2b)
    y = fused @ h1w + h1b
    y = (y - bnm) / jnp.sqrt(bnv + 1e-5) * bng + bnb
    y = jnp.maximum(y, 0.0)
    return y @ h2w + h2b


def _reference_mixed(x1_nchw, x2, params, mxu_dtype=jnp.bfloat16):
    # Pure-JAX reference mirroring the kernel's fused/folded/bf16 math exactly.
    (encw, encb, projw, projb, h1w, h1b, h2w, h2b, n_out) = _prepare_params(
        params, mxu_dtype=mxu_dtype)
    B = x1_nchw.shape[0]
    x = jnp.concatenate([x1_nchw.reshape(B, -1), x2], axis=1).astype(mxu_dtype)
    f32 = jnp.float32
    enc = jnp.maximum(jnp.dot(x, encw, preferred_element_type=f32) + encb, 0.0)
    fused = jnp.dot(enc.astype(mxu_dtype), projw, preferred_element_type=f32) + projb
    y = jnp.maximum(jnp.dot(fused.astype(mxu_dtype), h1w,
                            preferred_element_type=f32) + h1b, 0.0)
    out = jnp.dot(y.astype(mxu_dtype), h2w, preferred_element_type=f32) + h2b
    return out[:, :n_out]


# ---------------------------------------------------------------------------
if __name__ == "__main__":
    # Small shapes: image modality C=4, H=W=8 (NCHW) -> D1=256, vector modality D2=32.
    # B=128 so the auto-picked batch tile (64) yields a 2-step "parallel" grid.
    B, C, H, W = 128, 4, 8, 8
    D1 = C * H * W          # 256
    D2 = 32
    E1 = E2 = 64            # E1+E2 = 128 -> full-width fused projector matmul
    HID = 128

    key = jax.random.PRNGKey(0)
    k_x1, k_x2, k_p = jax.random.split(key, 3)
    x1 = jax.random.normal(k_x1, (B, C, H, W), jnp.float32)   # NCHW, as in PyTorch
    x2 = jax.random.normal(k_x2, (B, D2), jnp.float32)
    params = _make_params(k_p, D1, D2, E1, E2, HID)

    logits = inter_modal_forward(x1, x2, params)
    logits = jax.block_until_ready(logits)
    assert logits.shape == (B, 2)

    # Strict check vs. a pure-JAX reference using identical fused/folded bf16 math.
    ref_mixed = _reference_mixed(x1, x2, params)
    assert jnp.allclose(logits, ref_mixed, atol=1e-4, rtol=1e-3), (
        float(jnp.max(jnp.abs(logits - ref_mixed))))

    # Loose check vs. the original f32 PyTorch-semantics forward (bf16 rounding slack).
    ref_f32 = _reference_f32(x1, x2, params)
    assert jnp.allclose(logits, ref_f32, atol=1e-2, rtol=1e-1), (
        float(jnp.max(jnp.abs(logits - ref_f32))))

    print("KERNEL_OK")
</pallas_src>

<mosaic_0001>
module attributes {stable_mosaic.version = 11 : i64} {
  func.func @inter_modal_kernel(%arg0: i32, %arg1: memref<64x288xbf16, #tpu.memory_space<vmem>>, %arg2: memref<288x128xbf16, #tpu.memory_space<vmem>>, %arg3: memref<1x128xf32, #tpu.memory_space<vmem>>, %arg4: memref<128x128xbf16, #tpu.memory_space<vmem>>, %arg5: memref<1x128xf32, #tpu.memory_space<vmem>>, %arg6: memref<128x128xbf16, #tpu.memory_space<vmem>>, %arg7: memref<1x128xf32, #tpu.memory_space<vmem>>, %arg8: memref<128x128xbf16, #tpu.memory_space<vmem>>, %arg9: memref<1x128xf32, #tpu.memory_space<vmem>>, %arg10: memref<64x128xf32, #tpu.memory_space<vmem>>) attributes {dimension_semantics = [#tpu.dimension_semantics<parallel>], iteration_bounds = array<i64: 2>, scalar_prefetch = 0 : i64, scratch_operands = 0 : i64, tpu.core_type = #tpu.core_type<tc>, window_params = [{transform_indices = @transform_0, window_bounds = array<i64: 64, 288>}, {pipeline_mode = #tpu.pipeline_mode<synchronous>, transform_indices = @transform_1, window_bounds = array<i64: 288, 128>}, {pipeline_mode = #tpu.pipeline_mode<synchronous>, transform_indices = @transform_2, window_bounds = array<i64: 1, 128>}, {pipeline_mode = #tpu.pipeline_mode<synchronous>, transform_indices = @transform_3, window_bounds = array<i64: 128, 128>}, {pipeline_mode = #tpu.pipeline_mode<synchronous>, transform_indices = @transform_4, window_bounds = array<i64: 1, 128>}, {pipeline_mode = #tpu.pipeline_mode<synchronous>, transform_indices = @transform_5, window_bounds = array<i64: 128, 128>}, {pipeline_mode = #tpu.pipeline_mode<synchronous>, transform_indices = @transform_6, window_bounds = array<i64: 1, 128>}, {pipeline_mode = #tpu.pipeline_mode<synchronous>, transform_indices = @transform_7, window_bounds = array<i64: 128, 128>}, {pipeline_mode = #tpu.pipeline_mode<synchronous>, transform_indices = @transform_8, window_bounds = array<i64: 1, 128>}, {transform_indices = @transform_9, window_bounds = array<i64: 64, 128>}]} {
    %c0 = arith.constant 0 : index
    %c0_0 = arith.constant 0 : index
    %0 = vector.load %arg1[%c0, %c0_0] : memref<64x288xbf16, #tpu.memory_space<vmem>>, vector<64x288xbf16>
    %c0_1 = arith.constant 0 : index
    %c0_2 = arith.constant 0 : index
    %1 = vector.load %arg2[%c0_1, %c0_2] : memref<288x128xbf16, #tpu.memory_space<vmem>>, vector<288x128xbf16>
    %cst = arith.constant dense<0.000000e+00> : vector<64x128xf32>
    %2 = tpu.matmul %0, %1, %cst {dimension_numbers = #tpu.dot_dimension_numbers<[1], [0], [0], [1], [0, 0, 1, 1], [], []>} : vector<64x288xbf16>, vector<288x128xbf16>, vector<64x128xf32> -> vector<64x128xf32>
    %c0_3 = arith.constant 0 : index
    %c0_4 = arith.constant 0 : index
    %3 = vector.load %arg3[%c0_3, %c0_4] : memref<1x128xf32, #tpu.memory_space<vmem>>, vector<1x128xf32>
    %4 = vector.broadcast %3 : vector<1x128xf32> to vector<64x128xf32>
    %5 = arith.addf %2, %4 : vector<64x128xf32>
    %cst_5 = arith.constant 0.000000e+00 : f32
    %6 = vector.broadcast %cst_5 : f32 to vector<64x128xf32>
    %7 = arith.maximumf %5, %6 : vector<64x128xf32>
    %8 = arith.truncf %7 : vector<64x128xf32> to vector<64x128xbf16>
    %c0_6 = arith.constant 0 : index
    %c0_7 = arith.constant 0 : index
    %9 = vector.load %arg4[%c0_6, %c0_7] : memref<128x128xbf16, #tpu.memory_space<vmem>>, vector<128x128xbf16>
    %cst_8 = arith.constant dense<0.000000e+00> : vector<64x128xf32>
    %10 = tpu.matmul %8, %9, %cst_8 {dimension_numbers = #tpu.dot_dimension_numbers<[1], [0], [0], [1], [0, 0, 1, 1], [], []>} : vector<64x128xbf16>, vector<128x128xbf16>, vector<64x128xf32> -> vector<64x128xf32>
    %c0_9 = arith.constant 0 : index
    %c0_10 = arith.constant 0 : index
    %11 = vector.load %arg5[%c0_9, %c0_10] : memref<1x128xf32, #tpu.memory_space<vmem>>, vector<1x128xf32>
    %12 = vector.broadcast %11 : vector<1x128xf32> to vector<64x128xf32>
    %13 = arith.addf %10, %12 : vector<64x128xf32>
    %14 = arith.truncf %13 : vector<64x128xf32> to vector<64x128xbf16>
    %c0_11 = arith.constant 0 : index
    %c0_12 = arith.constant 0 : index
    %15 = vector.load %arg6[%c0_11, %c0_12] : memref<128x128xbf16, #tpu.memory_space<vmem>>, vector<128x128xbf16>
    %cst_13 = arith.constant dense<0.000000e+00> : vector<64x128xf32>
    %16 = tpu.matmul %14, %15, %cst_13 {dimension_numbers = #tpu.dot_dimension_numbers<[1], [0], [0], [1], [0, 0, 1, 1], [], []>} : vector<64x128xbf16>, vector<128x128xbf16>, vector<64x128xf32> -> vector<64x128xf32>
    %c0_14 = arith.constant 0 : index
    %c0_15 = arith.constant 0 : index
    %17 = vector.load %arg7[%c0_14, %c0_15] : memref<1x128xf32, #tpu.memory_space<vmem>>, vector<1x128xf32>
    %18 = vector.broadcast %17 : vector<1x128xf32> to vector<64x128xf32>
    %19 = arith.addf %16, %18 : vector<64x128xf32>
    %cst_16 = arith.constant 0.000000e+00 : f32
    %20 = vector.broadcast %cst_16 : f32 to vector<64x128xf32>
    %21 = arith.maximumf %19, %20 : vector<64x128xf32>
    %22 = arith.truncf %21 : vector<64x128xf32> to vector<64x128xbf16>
    %c0_17 = arith.constant 0 : index
    %c0_18 = arith.constant 0 : index
    %23 = vector.load %arg8[%c0_17, %c0_18] : memref<128x128xbf16, #tpu.memory_space<vmem>>, vector<128x128xbf16>
    %cst_19 = arith.constant dense<0.000000e+00> : vector<64x128xf32>
    %24 = tpu.matmul %22, %23, %cst_19 {dimension_numbers = #tpu.dot_dimension_numbers<[1], [0], [0], [1], [0, 0, 1, 1], [], []>} : vector<64x128xbf16>, vector<128x128xbf16>, vector<64x128xf32> -> vector<64x128xf32>
    %c0_20 = arith.constant 0 : index
    %c0_21 = arith.constant 0 : index
    %25 = vector.load %arg9[%c0_20, %c0_21] : memref<1x128xf32, #tpu.memory_space<vmem>>, vector<1x128xf32>
    %26 = vector.broadcast %25 : vector<1x128xf32> to vector<64x128xf32>
    %27 = arith.addf %24, %26 : vector<64x128xf32>
    %c0_22 = arith.constant 0 : index
    %c0_23 = arith.constant 0 : index
    %28 = vector.load %arg10[%c0_22, %c0_23] : memref<64x128xf32, #tpu.memory_space<vmem>>, vector<64x128xf32>
    tpu.vector_store %arg10[%c0_22, %c0_23], %27 {strides = array<i32>} : memref<64x128xf32, #tpu.memory_space<vmem>>, vector<64x128xf32>,
    return
  }
  func.func @transform_0(%arg0: i32) -> (i32, i32) {
    %c0_i32 = arith.constant 0 : i32
    %c0_i32_0 = arith.constant 0 : i32
    return %arg0, %c0_i32 : i32, i32
  }
  func.func @transform_1(%arg0: i32) -> (i32, i32) {
    %c0_i32 = arith.constant 0 : i32
    %c0_i32_0 = arith.constant 0 : i32
    %c0_i32_1 = arith.constant 0 : i32
    return %c0_i32, %c0_i32_0 : i32, i32
  }
  func.func @transform_2(%arg0: i32) -> (i32, i32) {
    %c0_i32 = arith.constant 0 : i32
    %c0_i32_0 = arith.constant 0 : i32
    %c0_i32_1 = arith.constant 0 : i32
    return %c0_i32, %c0_i32_0 : i32, i32
  }
  func.func @transform_3(%arg0: i32) -> (i32, i32) {
    %c0_i32 = arith.constant 0 : i32
    %c0_i32_0 = arith.constant 0 : i32
    %c0_i32_1 = arith.constant 0 : i32
    return %c0_i32, %c0_i32_0 : i32, i32
  }
  func.func @transform_4(%arg0: i32) -> (i32, i32) {
    %c0_i32 = arith.constant 0 : i32
    %c0_i32_0 = arith.constant 0 : i32
    %c0_i32_1 = arith.constant 0 : i32
    return %c0_i32, %c0_i32_0 : i32, i32
  }
  func.func @transform_5(%arg0: i32) -> (i32, i32) {
    %c0_i32 = arith.constant 0 : i32
    %c0_i32_0 = arith.constant 0 : i32
    %c0_i32_1 = arith.constant 0 : i32
    return %c0_i32, %c0_i32_0 : i32, i32
  }
  func.func @transform_6(%arg0: i32) -> (i32, i32) {
    %c0_i32 = arith.constant 0 : i32
    %c0_i32_0 = arith.constant 0 : i32
    %c0_i32_1 = arith.constant 0 : i32
    return %c0_i32, %c0_i32_0 : i32, i32
  }
  func.func @transform_7(%arg0: i32) -> (i32, i32) {
    %c0_i32 = arith.constant 0 : i32
    %c0_i32_0 = arith.constant 0 : i32
    %c0_i32_1 = arith.constant 0 : i32
    return %c0_i32, %c0_i32_0 : i32, i32
  }
  func.func @transform_8(%arg0: i32) -> (i32, i32) {
    %c0_i32 = arith.constant 0 : i32
    %c0_i32_0 = arith.constant 0 : i32
    %c0_i32_1 = arith.constant 0 : i32
    return %c0_i32, %c0_i32_0 : i32, i32
  }
  func.func @transform_9(%arg0: i32) -> (i32, i32) {
    %c0_i32 = arith.constant 0 : i32
    %c0_i32_0 = arith.constant 0 : i32
    return %arg0, %c0_i32 : i32, i32
  }
}

module attributes {stable_mosaic.version = 11 : i64} {
  func.func @inter_modal_kernel(%arg0: i32, %arg1: memref<64x288xbf16, #tpu.memory_space<vmem>>, %arg2: memref<288x128xbf16, #tpu.memory_space<vmem>>, %arg3: memref<1x128xf32, #tpu.memory_space<vmem>>, %arg4: memref<128x128xbf16, #tpu.memory_space<vmem>>, %arg5: memref<1x128xf32, #tpu.memory_space<vmem>>, %arg6: memref<128x128xbf16, #tpu.memory_space<vmem>>, %arg7: memref<1x128xf32, #tpu.memory_space<vmem>>, %arg8: memref<128x128xbf16, #tpu.memory_space<vmem>>, %arg9: memref<1x128xf32, #tpu.memory_space<vmem>>, %arg10: memref<64x128xf32, #tpu.memory_space<vmem>>) attributes {dimension_semantics = [#tpu.dimension_semantics<parallel>], iteration_bounds = array<i64: 2>, scalar_prefetch = 0 : i64, scratch_operands = 0 : i64, tpu.core_type = #tpu.core_type<tc>, window_params = [{transform_indices = @transform_0, window_bounds = array<i64: 64, 288>}, {pipeline_mode = #tpu.pipeline_mode<synchronous>, transform_indices = @transform_1, window_bounds = array<i64: 288, 128>}, {pipeline_mode = #tpu.pipeline_mode<synchronous>, transform_indices = @transform_2, window_bounds = array<i64: 1, 128>}, {pipeline_mode = #tpu.pipeline_mode<synchronous>, transform_indices = @transform_3, window_bounds = array<i64: 128, 128>}, {pipeline_mode = #tpu.pipeline_mode<synchronous>, transform_indices = @transform_4, window_bounds = array<i64: 1, 128>}, {pipeline_mode = #tpu.pipeline_mode<synchronous>, transform_indices = @transform_5, window_bounds = array<i64: 128, 128>}, {pipeline_mode = #tpu.pipeline_mode<synchronous>, transform_indices = @transform_6, window_bounds = array<i64: 1, 128>}, {pipeline_mode = #tpu.pipeline_mode<synchronous>, transform_indices = @transform_7, window_bounds = array<i64: 128, 128>}, {pipeline_mode = #tpu.pipeline_mode<synchronous>, transform_indices = @transform_8, window_bounds = array<i64: 1, 128>}, {transform_indices = @transform_9, window_bounds = array<i64: 64, 128>}]} {
    %c0 = arith.constant 0 : index
    %c0_0 = arith.constant 0 : index
    %0 = vector.load %arg1[%c0, %c0_0] : memref<64x288xbf16, #tpu.memory_space<vmem>>, vector<64x288xbf16>
    %c0_1 = arith.constant 0 : index
    %c0_2 = arith.constant 0 : index
    %1 = vector.load %arg2[%c0_1, %c0_2] : memref<288x128xbf16, #tpu.memory_space<vmem>>, vector<288x128xbf16>
    %cst = arith.constant dense<0.000000e+00> : vector<64x128xf32>
    %2 = tpu.matmul %0, %1, %cst {dimension_numbers = #tpu.dot_dimension_numbers<[1], [0], [0], [1], [0, 0, 1, 1], [], []>} : vector<64x288xbf16>, vector<288x128xbf16>, vector<64x128xf32> -> vector<64x128xf32>
    %c0_3 = arith.constant 0 : index
    %c0_4 = arith.constant 0 : index
    %3 = vector.load %arg3[%c0_3, %c0_4] : memref<1x128xf32, #tpu.memory_space<vmem>>, vector<1x128xf32>
    %4 = vector.broadcast %3 : vector<1x128xf32> to vector<64x128xf32>
    %5 = arith.addf %2, %4 : vector<64x128xf32>
    %cst_5 = arith.constant 0.000000e+00 : f32
    %6 = vector.broadcast %cst_5 : f32 to vector<64x128xf32>
    %7 = arith.maximumf %5, %6 : vector<64x128xf32>
    %8 = arith.truncf %7 : vector<64x128xf32> to vector<64x128xbf16>
    %c0_6 = arith.constant 0 : index
    %c0_7 = arith.constant 0 : index
    %9 = vector.load %arg4[%c0_6, %c0_7] : memref<128x128xbf16, #tpu.memory_space<vmem>>, vector<128x128xbf16>
    %cst_8 = arith.constant dense<0.000000e+00> : vector<64x128xf32>
    %10 = tpu.matmul %8, %9, %cst_8 {dimension_numbers = #tpu.dot_dimension_numbers<[1], [0], [0], [1], [0, 0, 1, 1], [], []>} : vector<64x128xbf16>, vector<128x128xbf16>, vector<64x128xf32> -> vector<64x128xf32>
    %c0_9 = arith.constant 0 : index
    %c0_10 = arith.constant 0 : index
    %11 = vector.load %arg5[%c0_9, %c0_10] : memref<1x128xf32, #tpu.memory_space<vmem>>, vector<1x128xf32>
    %12 = vector.broadcast %11 : vector<1x128xf32> to vector<64x128xf32>
    %13 = arith.addf %10, %12 : vector<64x128xf32>
    %14 = arith.truncf %13 : vector<64x128xf32> to vector<64x128xbf16>
    %c0_11 = arith.constant 0 : index
    %c0_12 = arith.constant 0 : index
    %15 = vector.load %arg6[%c0_11, %c0_12] : memref<128x128xbf16, #tpu.memory_space<vmem>>, vector<128x128xbf16>
    %cst_13 = arith.constant dense<0.000000e+00> : vector<64x128xf32>
    %16 = tpu.matmul %14, %15, %cst_13 {dimension_numbers = #tpu.dot_dimension_numbers<[1], [0], [0], [1], [0, 0, 1, 1], [], []>} : vector<64x128xbf16>, vector<128x128xbf16>, vector<64x128xf32> -> vector<64x128xf32>
    %c0_14 = arith.constant 0 : index
    %c0_15 = arith.constant 0 : index
    %17 = vector.load %arg7[%c0_14, %c0_15] : memref<1x128xf32, #tpu.memory_space<vmem>>, vector<1x128xf32>
    %18 = vector.broadcast %17 : vector<1x128xf32> to vector<64x128xf32>
    %19 = arith.addf %16, %18 : vector<64x128xf32>
    %cst_16 = arith.constant 0.000000e+00 : f32
    %20 = vector.broadcast %cst_16 : f32 to vector<64x128xf32>
    %21 = arith.maximumf %19, %20 : vector<64x128xf32>
    %22 = arith.truncf %21 : vector<64x128xf32> to vector<64x128xbf16>
    %c0_17 = arith.constant 0 : index
    %c0_18 = arith.constant 0 : index
    %23 = vector.load %arg8[%c0_17, %c0_18] : memref<128x128xbf16, #tpu.memory_space<vmem>>, vector<128x128xbf16>
    %cst_19 = arith.constant dense<0.000000e+00> : vector<64x128xf32>
    %24 = tpu.matmul %22, %23, %cst_19 {dimension_numbers = #tpu.dot_dimension_numbers<[1], [0], [0], [1], [0, 0, 1, 1], [], []>} : vector<64x128xbf16>, vector<128x128xbf16>, vector<64x128xf32> -> vector<64x128xf32>
    %c0_20 = arith.constant 0 : index
    %c0_21 = arith.constant 0 : index
    %25 = vector.load %arg9[%c0_20, %c0_21] : memref<1x128xf32, #tpu.memory_space<vmem>>, vector<1x128xf32>
    %26 = vector.broadcast %25 : vector<1x128xf32> to vector<64x128xf32>
    %27 = arith.addf %24, %26 : vector<64x128xf32>
    %c0_22 = arith.constant 0 : index
    %c0_23 = arith.constant 0 : index
    %28 = vector.load %arg10[%c0_22, %c0_23] : memref<64x128xf32, #tpu.memory_space<vmem>>, vector<64x128xf32>
    tpu.vector_store %arg10[%c0_22, %c0_23], %27 {strides = array<i32>} : memref<64x128xf32, #tpu.memory_space<vmem>>, vector<64x128xf32>,
    return
  }
  func.func @transform_0(%arg0: i32) -> (i32, i32) {
    %c0_i32 = arith.constant 0 : i32
    %c0_i32_0 = arith.constant 0 : i32
    return %arg0, %c0_i32 : i32, i32
  }
  func.func @transform_1(%arg0: i32) -> (i32, i32) {
    %c0_i32 = arith.constant 0 : i32
    %c0_i32_0 = arith.constant 0 : i32
    %c0_i32_1 = arith.constant 0 : i32
    return %c0_i32, %c0_i32_0 : i32, i32
  }
  func.func @transform_2(%arg0: i32) -> (i32, i32) {
    %c0_i32 = arith.constant 0 : i32
    %c0_i32_0 = arith.constant 0 : i32
    %c0_i32_1 = arith.constant 0 : i32
    return %c0_i32, %c0_i32_0 : i32, i32
  }
  func.func @transform_3(%arg0: i32) -> (i32, i32) {
    %c0_i32 = arith.constant 0 : i32
    %c0_i32_0 = arith.constant 0 : i32
    %c0_i32_1 = arith.constant 0 : i32
    return %c0_i32, %c0_i32_0 : i32, i32
  }
  func.func @transform_4(%arg0: i32) -> (i32, i32) {
    %c0_i32 = arith.constant 0 : i32
    %c0_i32_0 = arith.constant 0 : i32
    %c0_i32_1 = arith.constant 0 : i32
    return %c0_i32, %c0_i32_0 : i32, i32
  }
  func.func @transform_5(%arg0: i32) -> (i32, i32) {
    %c0_i32 = arith.constant 0 : i32
    %c0_i32_0 = arith.constant 0 : i32
    %c0_i32_1 = arith.constant 0 : i32
    return %c0_i32, %c0_i32_0 : i32, i32
  }
  func.func @transform_6(%arg0: i32) -> (i32, i32) {
    %c0_i32 = arith.constant 0 : i32
    %c0_i32_0 = arith.constant 0 : i32
    %c0_i32_1 = arith.constant 0 : i32
    return %c0_i32, %c0_i32_0 : i32, i32
  }
  func.func @transform_7(%arg0: i32) -> (i32, i32) {
    %c0_i32 = arith.constant 0 : i32
    %c0_i32_0 = arith.constant 0 : i32
    %c0_i32_1 = arith.constant 0 : i32
    return %c0_i32, %c0_i32_0 : i32, i32
  }
  func.func @transform_8(%arg0: i32) -> (i32, i32) {
    %c0_i32 = arith.constant 0 : i32
    %c0_i32_0 = arith.constant 0 : i32
    %c0_i32_1 = arith.constant 0 : i32
    return %c0_i32, %c0_i32_0 : i32, i32
  }
  func.func @transform_9(%arg0: i32) -> (i32, i32) {
    %c0_i32 = arith.constant 0 : i32
    %c0_i32_0 = arith.constant 0 : i32
    return %arg0, %c0_i32 : i32, i32
  }
}

</mosaic_0001>

<llo_original>
// kernel: tpu_custom_call.1
$region0: #{tpu_custom_call.1}
  #allocation0 [shape = 'u32[]', space=smem, size = 0x4, offset = 0x4, fixed_abs, tag = 'smem constant byte address 0x4 - core index']
  #allocation1 [shape = 'u32[144,128]{1,0:T(1,128)}', space=vmem, size = 0x12000, scoped, tag = 'internal scratch']
  %s0 = inlined_call_operand.vmem [shape: bf16[128,288], index: 0, kind: input, shape index: {}]
  %s1 = inlined_call_operand.vmem [shape: bf16[288,128], index: 1, kind: input, shape index: {}]
  %s2 = inlined_call_operand.vmem [shape: f32[1,128], index: 2, kind: input, shape index: {}]
  %s3 = inlined_call_operand.vmem [shape: bf16[128,128], index: 3, kind: input, shape index: {}]
  %s4 = inlined_call_operand.vmem [shape: f32[1,128], index: 4, kind: input, shape index: {}]
  %s5 = inlined_call_operand.vmem [shape: bf16[128,128], index: 5, kind: input, shape index: {}]
  %s6 = inlined_call_operand.vmem [shape: f32[1,128], index: 6, kind: input, shape index: {}]
  %s7 = inlined_call_operand.vmem [shape: bf16[128,128], index: 7, kind: input, shape index: {}]
  %s8 = inlined_call_operand.vmem [shape: f32[1,128], index: 8, kind: input, shape index: {}]
  %s9 = inlined_call_operand.hbm [shape: f32[128,128], index: 9, kind: output, shape index: {}]
  %s10 = sld [smem:[#allocation0]]
  $region69: #{tpu_custom_call.1} parent=0
    _
  %s12 = ssub.s32 1, %s10
  %s13 = scalar_select 0, %s12, %s10
  $region1: #{tpu_custom_call.1} parent=0
    #allocation2 [shape = 'u8[65536]{0}', space=vmem, size = 0x10000, scoped, tag = 'output window, operand 0']
    #allocation3 [shape = 's32[2]{0}', space=sflag, size = 0x8, scoped, tag = 'scoped memory for tpu_custom_call.1']
    %14 = vsyncpa [#allocation3], 0
    %s15 = scalar_lea.sflag [#allocation3], 1
    %16 = vsyncpa %s15, 0
    loop: start=0, step=1, limit=4
    $region2: #{tpu_custom_call.1} parent=1 // loop_pre_header
      _
    $region3: #{tpu_custom_call.1} parent=1 // loop_header
      %s18 = sphi 0, %s22
      %p19 = scmp.ge.s32.totalorder %s18, 4
      %s28 = sphi 0, %s30
      %s31 = sphi 0, %s28
      %s32 = sphi 0, %s31
      %s48 = sphi 0, %s32
      %s52 = sphi 0, %s52
      %s54 = sphi 0, %s52
      %s55 = sphi 0, %s54
      %s69 = sphi 0, %s55
      %s73 = sphi 0, %s73
      %s75 = sphi 0, %s73
      %s76 = sphi 0, %s75
      %s90 = sphi 0, %s76
      %s94 = sphi 0, %s94
      %s96 = sphi 0, %s94
      %s97 = sphi 0, %s96
      %s111 = sphi 0, %s97
      %s115 = sphi 0, %s115
      %s117 = sphi 0, %s115
      %s118 = sphi 0, %s117
      %s132 = sphi 0, %s118
      %s136 = sphi 0, %s136
      %s138 = sphi 0, %s136
      %s139 = sphi 0, %s138
      %s153 = sphi 0, %s139
      %s157 = sphi 0, %s157
      %s159 = sphi 0, %s157
      %s160 = sphi 0, %s159
      %s174 = sphi 0, %s160
      %s178 = sphi 0, %s178
      %s180 = sphi 0, %s178
      %s181 = sphi 0, %s180
      %s195 = sphi 0, %s181
      %s199 = sphi 0, %s199
      %s201 = sphi 0, %s199
      %s202 = sphi 0, %s201
      %s216 = sphi 0, %s202
      %s222 = sphi 0, %s224
      %s225 = sphi 0, %s222
      %s226 = sphi 0, %s225
      %s242 = sphi 0, %s226
    $region4: #{tpu_custom_call.1} parent=1 // loop_header_branch
      %21 = sbr.rel (%p19) target = $region8
    $region5: #{tpu_custom_call.1} parent=1 // loop_body
      %s23 = ssub.s32 %s18, 1
      %s24 = ssub.s32 %s18, 2
      %s25 = sadd.s32 %s18, 1
      %s26 = ssub.s32 %s18, %s25
      %p27 = scmp.eq.s32.totalorder %s26, 0
      %s29 = sadd.s32 %s28, 1
      %s30 = scalar_select %p27, %s28, %s29
      %p33 = pneg %p27
      %p34 = scmp.eq.s32.totalorder %s18, 1
      %p35 = por %p33, %p34
      %p36 = scmp.ne.s32.totalorder %s28, %s31
      %p37 = scmp.eq.s32.totalorder %s18, 0
      %p38 = por %p36, %p37
      %p39 = scmp.ne.s32.totalorder %s28, %s31
      %p40 = scmp.eq.s32.totalorder %s23, 1
      %p41 = por %p39, %p40
      %p42 = scmp.ne.s32.totalorder %s31, %s32
      %p43 = scmp.eq.s32.totalorder %s23, 0
      %p44 = por %p42, %p43
      %p45 = scmp.ne.s32.totalorder %s31, %s32
      %p46 = scmp.eq.s32.totalorder %s24, 1
      %p47 = por %p45, %p46
      %p49 = scmp.ne.s32.totalorder %s32, %s48
      %p50 = scmp.eq.s32.totalorder %s24, 0
      %p51 = por %p49, %p50
      %s53 = sadd.s32 %s52, 1
      %p56 = scmp.eq.s32.totalorder %s18, 1
      %p57 = scmp.ne.s32.totalorder %s52, %s54
      %p58 = scmp.eq.s32.totalorder %s18, 0
      %p59 = por %p57, %p58
      %p60 = scmp.ne.s32.totalorder %s52, %s54
      %p61 = scmp.eq.s32.totalorder %s23, 1
      %p62 = por %p60, %p61
      %p63 = scmp.ne.s32.totalorder %s54, %s55
      %p64 = scmp.eq.s32.totalorder %s23, 0
      %p65 = por %p63, %p64
      %p66 = scmp.ne.s32.totalorder %s54, %s55
      %p67 = scmp.eq.s32.totalorder %s24, 1
      %p68 = por %p66, %p67
      %p70 = scmp.ne.s32.totalorder %s55, %s69
      %p71 = scmp.eq.s32.totalorder %s24, 0
      %p72 = por %p70, %p71
      %s74 = sadd.s32 %s73, 1
      %p77 = scmp.eq.s32.totalorder %s18, 1
      %p78 = scmp.ne.s32.totalorder %s73, %s75
      %p79 = scmp.eq.s32.totalorder %s18, 0
      %p80 = por %p78, %p79
      %p81 = scmp.ne.s32.totalorder %s73, %s75
      %p82 = scmp.eq.s32.totalorder %s23, 1
      %p83 = por %p81, %p82
      %p84 = scmp.ne.s32.totalorder %s75, %s76
      %p85 = scmp.eq.s32.totalorder %s23, 0
      %p86 = por %p84, %p85
      %p87 = scmp.ne.s32.totalorder %s75, %s76
      %p88 = scmp.eq.s32.totalorder %s24, 1
      %p89 = por %p87, %p88
      %p91 = scmp.ne.s32.totalorder %s76, %s90
      %p92 = scmp.eq.s32.totalorder %s24, 0
      %p93 = por %p91, %p92
      %s95 = sadd.s32 %s94, 1
      %p98 = scmp.eq.s32.totalorder %s18, 1
      %p99 = scmp.ne.s32.totalorder %s94, %s96
      %p100 = scmp.eq.s32.totalorder %s18, 0
      %p101 = por %p99, %p100
      %p102 = scmp.ne.s32.totalorder %s94, %s96
      %p103 = scmp.eq.s32.totalorder %s23, 1
      %p104 = por %p102, %p103
      %p105 = scmp.ne.s32.totalorder %s96, %s97
      %p106 = scmp.eq.s32.totalorder %s23, 0
      %p107 = por %p105, %p106
      %p108 = scmp.ne.s32.totalorder %s96, %s97
      %p109 = scmp.eq.s32.totalorder %s24, 1
      %p110 = por %p108, %p109
      %p112 = scmp.ne.s32.totalorder %s97, %s111
      %p113 = scmp.eq.s32.totalorder %s24, 0
      %p114 = por %p112, %p113
      %s116 = sadd.s32 %s115, 1
      %p119 = scmp.eq.s32.totalorder %s18, 1
      %p120 = scmp.ne.s32.totalorder %s115, %s117
      %p121 = scmp.eq.s32.totalorder %s18, 0
      %p122 = por %p120, %p121
      %p123 = scmp.ne.s32.totalorder %s115, %s117
      %p124 = scmp.eq.s32.totalorder %s23, 1
      %p125 = por %p123, %p124
      %p126 = scmp.ne.s32.totalorder %s117, %s118
      %p127 = scmp.eq.s32.totalorder %s23, 0
      %p128 = por %p126, %p127
      %p129 = scmp.ne.s32.totalorder %s117, %s118
      %p130 = scmp.eq.s32.totalorder %s24, 1
      %p131 = por %p129, %p130
      %p133 = scmp.ne.s32.totalorder %s118, %s132
      %p134 = scmp.eq.s32.totalorder %s24, 0
      %p135 = por %p133, %p134
      %s137 = sadd.s32 %s136, 1
      %p140 = scmp.eq.s32.totalorder %s18, 1
      %p141 = scmp.ne.s32.totalorder %s136, %s138
      %p142 = scmp.eq.s32.totalorder %s18, 0
      %p143 = por %p141, %p142
      %p144 = scmp.ne.s32.totalorder %s136, %s138
      %p145 = scmp.eq.s32.totalorder %s23, 1
      %p146 = por %p144, %p145
      %p147 = scmp.ne.s32.totalorder %s138, %s139
      %p148 = scmp.eq.s32.totalorder %s23, 0
      %p149 = por %p147, %p148
      %p150 = scmp.ne.s32.totalorder %s138, %s139
      %p151 = scmp.eq.s32.totalorder %s24, 1
      %p152 = por %p150, %p151
      %p154 = scmp.ne.s32.totalorder %s139, %s153
      %p155 = scmp.eq.s32.totalorder %s24, 0
      %p156 = por %p154, %p155
      %s158 = sadd.s32 %s157, 1
      %p161 = scmp.eq.s32.totalorder %s18, 1
      %p162 = scmp.ne.s32.totalorder %s157, %s159
      %p163 = scmp.eq.s32.totalorder %s18, 0
      %p164 = por %p162, %p163
      %p165 = scmp.ne.s32.totalorder %s157, %s159
      %p166 = scmp.eq.s32.totalorder %s23, 1
      %p167 = por %p165, %p166
      %p168 = scmp.ne.s32.totalorder %s159, %s160
      %p169 = scmp.eq.s32.totalorder %s23, 0
      %p170 = por %p168, %p169
      %p171 = scmp.ne.s32.totalorder %s159, %s160
      %p172 = scmp.eq.s32.totalorder %s24, 1
      %p173 = por %p171, %p172
      %p175 = scmp.ne.s32.totalorder %s160, %s174
      %p176 = scmp.eq.s32.totalorder %s24, 0
      %p177 = por %p175, %p176
      %s179 = sadd.s32 %s178, 1
      %p182 = scmp.eq.s32.totalorder %s18, 1
      %p183 = scmp.ne.s32.totalorder %s178, %s180
      %p184 = scmp.eq.s32.totalorder %s18, 0
      %p185 = por %p183, %p184
      %p186 = scmp.ne.s32.totalorder %s178, %s180
      %p187 = scmp.eq.s32.totalorder %s23, 1
      %p188 = por %p186, %p187
      %p189 = scmp.ne.s32.totalorder %s180, %s181
      %p190 = scmp.eq.s32.totalorder %s23, 0
      %p191 = por %p189, %p190
      %p192 = scmp.ne.s32.totalorder %s180, %s181
      %p193 = scmp.eq.s32.totalorder %s24, 1
      %p194 = por %p192, %p193
      %p196 = scmp.ne.s32.totalorder %s181, %s195
      %p197 = scmp.eq.s32.totalorder %s24, 0
      %p198 = por %p196, %p197
      %s200 = sadd.s32 %s199, 1
      %p203 = scmp.eq.s32.totalorder %s18, 1
      %p204 = scmp.ne.s32.totalorder %s199, %s201
      %p205 = scmp.eq.s32.totalorder %s18, 0
      %p206 = por %p204, %p205
      %p207 = scmp.ne.s32.totalorder %s199, %s201
      %p208 = scmp.eq.s32.totalorder %s23, 1
      %p209 = por %p207, %p208
      %p210 = scmp.ne.s32.totalorder %s201, %s202
      %p211 = scmp.eq.s32.totalorder %s23, 0
      %p212 = por %p210, %p211
      %p213 = scmp.ne.s32.totalorder %s201, %s202
      %p214 = scmp.eq.s32.totalorder %s24, 1
      %p215 = por %p213, %p214
      %p217 = scmp.ne.s32.totalorder %s202, %s216
      %p218 = scmp.eq.s32.totalorder %s24, 0
      %p219 = por %p217, %p218
      %s220 = ssub.s32 %s18, %s25
      %p221 = scmp.eq.s32.totalorder %s220, 0
      %s223 = sadd.s32 %s222, 1
      %s224 = scalar_select %p221, %s222, %s223
      %p227 = pneg %p221
      %p228 = scmp.eq.s32.totalorder %s18, 1
      %p229 = por %p227, %p228
      %p230 = scmp.ne.s32.totalorder %s222, %s225
      %p231 = scmp.eq.s32.totalorder %s18, 0
      %p232 = por %p230, %p231
      %p233 = scmp.ne.s32.totalorder %s222, %s225
      %p234 = scmp.eq.s32.totalorder %s23, 1
      %p235 = por %p233, %p234
      %p236 = scmp.ne.s32.totalorder %s225, %s226
      %p237 = scmp.eq.s32.totalorder %s23, 0
      %p238 = por %p236, %p237
      %p239 = scmp.ne.s32.totalorder %s225, %s226
      %p240 = scmp.eq.s32.totalorder %s24, 1
      %p241 = por %p239, %p240
      %p243 = scmp.ne.s32.totalorder %s226, %s242
      %p244 = scmp.eq.s32.totalorder %s24, 0
      %p245 = por %p243, %p244
      %p246 = scmp.le.s32.totalorder 1, %s18
      %p247 = scmp.lt.s32.totalorder %s18, 3
      %p248 = pnand %p246, %p247
      %p249 = pneg %p248
      // Predicated region
      $region9: #{tpu_custom_call.1} parent=5 // pred_check
        _
      $region10: #{tpu_custom_call.1} parent=5 // pred_check_branch
        %251 = sbr.rel (%p248) target = $region12
      $region11: #{tpu_custom_call.1} parent=5 // pred_region
        %s252 = ssub.s32 %s18, 1
        // Predicated region
        $region13: #{tpu_custom_call.1} parent=11 // pred_check
          %p253 = pneg %p65
        $region14: #{tpu_custom_call.1} parent=11 // pred_check_branch
          %255 = sbr.rel (%p253) target = $region16
        $region15: #{tpu_custom_call.1} parent=11 // pred_region
          _
        $region16: #{tpu_custom_call.1} parent=11 // pred_fallthru
          _
        // Predicated region
        $region17: #{tpu_custom_call.1} parent=11 // pred_check
          %p256 = pneg %p86
        $region18: #{tpu_custom_call.1} parent=11 // pred_check_branch
          %258 = sbr.rel (%p256) target = $region20
        $region19: #{tpu_custom_call.1} parent=11 // pred_region
          _
        $region20: #{tpu_custom_call.1} parent=11 // pred_fallthru
          _
        // Predicated region
        $region21: #{tpu_custom_call.1} parent=11 // pred_check
          %p259 = pneg %p107
        $region22: #{tpu_custom_call.1} parent=11 // pred_check_branch
          %261 = sbr.rel (%p259) target = $region24
        $region23: #{tpu_custom_call.1} parent=11 // pred_region
          _
        $region24: #{tpu_custom_call.1} parent=11 // pred_fallthru
          _
        // Predicated region
        $region25: #{tpu_custom_call.1} parent=11 // pred_check
          %p262 = pneg %p128
        $region26: #{tpu_custom_call.1} parent=11 // pred_check_branch
          %264 = sbr.rel (%p262) target = $region28
        $region27: #{tpu_custom_call.1} parent=11 // pred_region
          _
        $region28: #{tpu_custom_call.1} parent=11 // pred_fallthru
          _
        // Predicated region
        $region29: #{tpu_custom_call.1} parent=11 // pred_check
          %p265 = pneg %p149
        $region30: #{tpu_custom_call.1} parent=11 // pred_check_branch
          %267 = sbr.rel (%p265) target = $region32
        $region31: #{tpu_custom_call.1} parent=11 // pred_region
          _
        $region32: #{tpu_custom_call.1} parent=11 // pred_fallthru
          _
        // Predicated region
        $region33: #{tpu_custom_call.1} parent=11 // pred_check
          %p268 = pneg %p170
        $region34: #{tpu_custom_call.1} parent=11 // pred_check_branch
          %270 = sbr.rel (%p268) target = $region36
        $region35: #{tpu_custom_call.1} parent=11 // pred_region
          _
        $region36: #{tpu_custom_call.1} parent=11 // pred_fallthru
          _
        // Predicated region
        $region37: #{tpu_custom_call.1} parent=11 // pred_check
          %p271 = pneg %p191
        $region38: #{tpu_custom_call.1} parent=11 // pred_check_branch
          %273 = sbr.rel (%p271) target = $region40
        $region39: #{tpu_custom_call.1} parent=11 // pred_region
          _
        $region40: #{tpu_custom_call.1} parent=11 // pred_fallthru
          _
        // Predicated region
        $region41: #{tpu_custom_call.1} parent=11 // pred_check
          %p274 = pneg %p212
        $region42: #{tpu_custom_call.1} parent=11 // pred_check_branch
          %276 = sbr.rel (%p274) target = $region44
        $region43: #{tpu_custom_call.1} parent=11 // pred_region
          _
        $region44: #{tpu_custom_call.1} parent=11 // pred_fallthru
          _
      $region12: #{tpu_custom_call.1} parent=5 // pred_fallthru
        _
      %p277 = scmp.lt.s32.totalorder %s18, 2
      // Predicated region
      $region45: #{tpu_custom_call.1} parent=5 // pred_check
        %p278 = pneg %p277
      $region46: #{tpu_custom_call.1} parent=5 // pred_check_branch
        %280 = sbr.rel (%p278) target = $region48
      $region47: #{tpu_custom_call.1} parent=5 // pred_region
        // Predicated region
        $region49: #{tpu_custom_call.1} parent=47 // pred_check
          %p281 = pneg %p38
        $region50: #{tpu_custom_call.1} parent=47 // pred_check_branch
          %283 = sbr.rel (%p281) target = $region52
        $region51: #{tpu_custom_call.1} parent=47 // pred_region
          %s284 = smul.u32 8, %s18
          %p285 = scmp.lt.s32.totalorder %s284, 15
          %s286 = scalar_select %p285, %s284, 15
          %s287 = smul.addr %s286, 3
          %s288 = smul.addr %s287, 4
          %s289 = scalar_lea.vmem %s0, %s288
          %s290 = smul.u32 8, %s18
        $region52: #{tpu_custom_call.1} parent=47 // pred_fallthru
          _
      $region48: #{tpu_custom_call.1} parent=5 // pred_fallthru
        _
      %p291 = scmp.le.s32.totalorder 1, %s18
      %p292 = scmp.lt.s32.totalorder %s18, 3
      %p293 = pnand %p291, %p292
      %p294 = pneg %p293
      // Predicated region
      $region53: #{tpu_custom_call.1} parent=5 // pred_check
        _
      $region54: #{tpu_custom_call.1} parent=5 // pred_check_branch
        %296 = sbr.rel (%p293) target = $region56
      $region55: #{tpu_custom_call.1} parent=5 // pred_region
        %s297 = ssub.s32 %s18, 1
        %s298 = smul.u32 8, %s23
        %p299 = scmp.lt.s32.totalorder %s298, 15
        %s300 = scalar_select %p299, %s298, 15
        %s301 = smul.addr %s300, 3
        %s302 = smul.addr %s301, 4
        %s303 = scalar_lea.vmem %s0, %s302
        %p304 = pneg %p44
        %p305 = pneg %p41
        %p306 = pneg %p65
        %p307 = pneg %p62
        %p308 = pneg %p86
        %p309 = pneg %p83
        %p310 = pneg %p107
        %p311 = pneg %p104
        %p312 = pneg %p128
        %p313 = pneg %p125
        %p314 = pneg %p149
        %p315 = pneg %p146
        %p316 = pneg %p170
        %p317 = pneg %p167
        %p318 = pneg %p191
        %p319 = pneg %p188
        %p320 = pneg %p212
        %p321 = pneg %p209
        %p322 = pneg %p238
        %p323 = pneg %p235
        %s324 = sand.u32 %s225, 1
        %s325 = scalar_lea.sflag [#allocation3], %s324
        %s326 = sand.u32 %s225, 1
        %s327 = smul.addr %s326, 64
        %s328 = scalar_lea.vmem [#allocation2], %s327
        %s329 = smul.u32 8, %s23
        %p330 = scmp.lt.s32.totalorder %s329, 15
        %s331 = scalar_select %p330, %s329, 15
        %s332 = smul.addr %s331, 3
        %s333 = smul.addr %s332, 4
        %s334 = scalar_lea.vmem %s0, %s333
        %s335 = smul.u32 8, %s23
        %s336 = smul.u32 8, %s23
        %v338 = vld [vmem:[%s334] sm:$0xff]
        %v339 = vld [vmem:[%s334 + $0x8] sm:$0xf]
        %v340 = vld [vmem:[%s334 + $0xc] sm:$0xff]
        %v341 = vld [vmem:[%s334 + $0x14] sm:$0xf]
        %v342 = vld [vmem:[%s334 + $0x18] sm:$0xff]
        %v343 = vld [vmem:[%s334 + $0x20] sm:$0xf]
        %v344 = vld [vmem:[%s334 + $0x24] sm:$0xff]
        %v345 = vld [vmem:[%s334 + $0x2c] sm:$0xf]
        %v346 = vld [vmem:[%s334 + $0x30] sm:$0xff]
        %v347 = vld [vmem:[%s334 + $0x38] sm:$0xf]
        %v348 = vld [vmem:[%s334 + $0x3c] sm:$0xff]
        %v349 = vld [vmem:[%s334 + $0x44] sm:$0xf]
        %v350 = vld [vmem:[%s334 + $0x48] sm:$0xff]
        %v351 = vld [vmem:[%s334 + $0x50] sm:$0xf]
        %v352 = vld [vmem:[%s334 + $0x54] sm:$0xff]
        %v353 = vld [vmem:[%s334 + $0x5c] sm:$0xf]
        %v354 = vld [vmem:[%s1] sm:$0xf]
        %v355 = vld [vmem:[%s1 + $0x4] sm:$0xf]
        %v356 = vld [vmem:[%s1 + $0x8] sm:$0xf]
        %v357 = vld [vmem:[%s1 + $0xc] sm:$0xf]
        %v358 = vld [vmem:[%s1 + $0x10] sm:$0xf]
        %v359 = vld [vmem:[%s1 + $0x14] sm:$0xf]
        %v360 = vld [vmem:[%s1 + $0x18] sm:$0xf]
        %v361 = vld [vmem:[%s1 + $0x1c] sm:$0xf]
        %v362 = vld [vmem:[%s1 + $0x20] sm:$0xf]
        %v363 = vld [vmem:[%s1 + $0x24] sm:$0xf]
        %v364 = vld [vmem:[%s1 + $0x28] sm:$0xf]
        %v365 = vld [vmem:[%s1 + $0x2c] sm:$0xf]
        %v366 = vld [vmem:[%s1 + $0x30] sm:$0xf]
        %v367 = vld [vmem:[%s1 + $0x34] sm:$0xf]
        %v368 = vld [vmem:[%s1 + $0x38] sm:$0xf]
        %v369 = vld [vmem:[%s1 + $0x3c] sm:$0xf]
        %v370 = vld [vmem:[%s1 + $0x40] sm:$0xf]
        %v371 = vld [vmem:[%s1 + $0x44] sm:$0xf]
        %v372 = vld [vmem:[%s1 + $0x48] sm:$0xf]
        %v373 = vld [vmem:[%s1 + $0x4c] sm:$0xf]
        %v374 = vld [vmem:[%s1 + $0x50] sm:$0xf]
        %v375 = vld [vmem:[%s1 + $0x54] sm:$0xf]
        %v376 = vld [vmem:[%s1 + $0x58] sm:$0xf]
        %v377 = vld [vmem:[%s1 + $0x5c] sm:$0xf]
        %v378 = vld [vmem:[%s1 + $0x60] sm:$0xf]
        %v379 = vld [vmem:[%s1 + $0x64] sm:$0xf]
        %v380 = vld [vmem:[%s1 + $0x68] sm:$0xf]
        %v381 = vld [vmem:[%s1 + $0x6c] sm:$0xf]
        %v382 = vld [vmem:[%s1 + $0x70] sm:$0xf]
        %v383 = vld [vmem:[%s1 + $0x74] sm:$0xf]
        %v384 = vld [vmem:[%s1 + $0x78] sm:$0xf]
        %v385 = vld [vmem:[%s1 + $0x7c] sm:$0xf]
        %v386 = vld [vmem:[%s1 + $0x80] sm:$0xf]
        %v387 = vld [vmem:[%s1 + $0x84] sm:$0xf]
        %v388 = vld [vmem:[%s1 + $0x88] sm:$0xf]
        %v389 = vld [vmem:[%s1 + $0x8c] sm:$0xf]
        %v390 = vld [vmem:[%s2] sm:$0x1]
        %v392 = vlaneseq
        %v393 = vshrl.u32 %v392, 7
        %v394 = vsub.s32 0, %v393
        %v395 = vrot.slane %v390, %v394
        %v413 = vunpack.c.l.b16 %v338
        %v414 = vunpack.c.h.b16 %v338
        %v415 = vunpack.c.l.b16 %v339
        %v416 = vunpack.c.l.b16 %v340
        %v417 = vunpack.c.h.b16 %v340
        %v418 = vunpack.c.l.b16 %v341
        %v419 = vunpack.c.l.b16 %v342
        %v420 = vunpack.c.h.b16 %v342
        %v421 = vunpack.c.l.b16 %v343
        %v422 = vunpack.c.l.b16 %v344
        %v423 = vunpack.c.h.b16 %v344
        %v424 = vunpack.c.l.b16 %v345
        %v425 = vunpack.c.l.b16 %v346
        %v426 = vunpack.c.h.b16 %v346
        %v427 = vunpack.c.l.b16 %v347
        %v428 = vunpack.c.l.b16 %v348
        %v429 = vunpack.c.h.b16 %v348
        %v430 = vunpack.c.l.b16 %v349
        %v431 = vunpack.c.l.b16 %v350
        %v432 = vunpack.c.h.b16 %v350
        %v433 = vunpack.c.l.b16 %v351
        %v434 = vunpack.c.l.b16 %v352
        %v435 = vunpack.c.h.b16 %v352
        %v436 = vunpack.c.l.b16 %v353
        %v437 = vpack.c.b16 %v416, %v413
        %v438 = vpack.c.b16 %v417, %v414
        %v439 = vpack.c.b16 %v418, %v415
        %v440 = vpack.c.b16 %v422, %v419
        %v441 = vpack.c.b16 %v423, %v420
        %v442 = vpack.c.b16 %v424, %v421
        %v443 = vpack.c.b16 %v428, %v425
        %v444 = vpack.c.b16 %v429, %v426
        %v445 = vpack.c.b16 %v430, %v427
        %v446 = vpack.c.b16 %v434, %v431
        %v447 = vpack.c.b16 %v435, %v432
        %v448 = vpack.c.b16 %v436, %v433
        %v493 = vunpack.c.l.b16 %v354
        %v494 = vunpack.c.l.b16 %v355
        %v495 = vunpack.c.l.b16 %v356
        %v496 = vunpack.c.l.b16 %v357
        %v497 = vunpack.c.l.b16 %v358
        %v498 = vunpack.c.l.b16 %v359
        %v499 = vunpack.c.l.b16 %v360
        %v500 = vunpack.c.l.b16 %v361
        %v501 = vunpack.c.l.b16 %v362
        %v502 = vunpack.c.l.b16 %v363
        %v503 = vunpack.c.l.b16 %v364
        %v504 = vunpack.c.l.b16 %v365
        %v505 = vunpack.c.l.b16 %v366
        %v506 = vunpack.c.l.b16 %v367
        %v507 = vunpack.c.l.b16 %v368
        %v508 = vunpack.c.l.b16 %v369
        %v509 = vunpack.c.l.b16 %v370
        %v510 = vunpack.c.l.b16 %v371
        %v511 = vunpack.c.l.b16 %v372
        %v512 = vunpack.c.l.b16 %v373
        %v513 = vunpack.c.l.b16 %v374
        %v514 = vunpack.c.l.b16 %v375
        %v515 = vunpack.c.l.b16 %v376
        %v516 = vunpack.c.l.b16 %v377
        %v517 = vunpack.c.l.b16 %v378
        %v518 = vunpack.c.l.b16 %v379
        %v519 = vunpack.c.l.b16 %v380
        %v520 = vunpack.c.l.b16 %v381
        %v521 = vunpack.c.l.b16 %v382
        %v522 = vunpack.c.l.b16 %v383
        %v523 = vunpack.c.l.b16 %v384
        %v524 = vunpack.c.l.b16 %v385
        %v525 = vunpack.c.l.b16 %v386
        %v526 = vunpack.c.l.b16 %v387
        %v527 = vunpack.c.l.b16 %v388
        %v528 = vunpack.c.l.b16 %v389
        %v529 = vpack.c.b16 %v494, %v493
        %v530 = vpack.c.b16 %v496, %v495
        %v531 = vpack.c.b16 %v498, %v497
        %v532 = vpack.c.b16 %v500, %v499
        %v533 = vpack.c.b16 %v502, %v501
        %v534 = vpack.c.b16 %v504, %v503
        %v535 = vpack.c.b16 %v506, %v505
        %v536 = vpack.c.b16 %v508, %v507
        %v537 = vpack.c.b16 %v510, %v509
        %v538 = vpack.c.b16 %v512, %v511
        %v539 = vpack.c.b16 %v514, %v513
        %v540 = vpack.c.b16 %v516, %v515
        %v541 = vpack.c.b16 %v518, %v517
        %v542 = vpack.c.b16 %v520, %v519
        %v543 = vpack.c.b16 %v522, %v521
        %v544 = vpack.c.b16 %v524, %v523
        %v545 = vpack.c.b16 %v526, %v525
        %v546 = vpack.c.b16 %v528, %v527
        %vm565 = vcmask 261120
        %v567 = vsel %vm565, %v439, 0
        %v570 = vsel %vm565, %v442, 0
        %v573 = vsel %vm565, %v445, 0
        %v576 = vsel %vm565, %v448, 0
        %578 = vmatprep.subr.bf16.mxu0 0
        %579 = vmatpush1.bf16.msra.mxu0 %v536
        %580 = vmatprep.subr.bf16.mxu0 0
        %581 = vmatpush1.bf16.msra.mxu0 %v535
        %582 = vmatprep.subr.bf16.mxu0 0
        %583 = vmatpush1.bf16.msra.mxu0 %v534
        %584 = vmatprep.subr.bf16.mxu0 0
        %585 = vmatpush1.bf16.msra.mxu0 %v533
        %586 = vmatprep.subr.bf16.mxu0 0
        %587 = vmatpush1.bf16.msra.mxu0 %v532
        %588 = vmatprep.subr.bf16.mxu0 0
        %589 = vmatpush1.bf16.msra.mxu0 %v531
        %590 = vmatprep.subr.bf16.mxu0 0
        %591 = vmatpush1.bf16.msra.mxu0 %v530
        %592 = vmatprep.subr.bf16.mxu0 0
        %593 = vmatpush1.bf16.msra.mxu0 %v529
        %594 = vmatprep.subr.bf16.mxu0 0
        %595 = vmatpush2.bf16.msra.mxu0 %v544
        %596 = vmatprep.subr.bf16.mxu0 0
        %597 = vmatpush2.bf16.msra.mxu0 %v543
        %598 = vmatprep.subr.bf16.mxu0 0
        %599 = vmatpush2.bf16.msra.mxu0 %v542
        %600 = vmatprep.subr.bf16.mxu0 0
        %601 = vmatpush2.bf16.msra.mxu0 %v541
        %602 = vmatprep.subr.bf16.mxu0 0
        %603 = vmatpush2.bf16.msra.mxu0 %v540
        %604 = vmatprep.subr.bf16.mxu0 0
        %605 = vmatpush2.bf16.msra.mxu0 %v539
        %606 = vmatprep.subr.bf16.mxu0 0
        %607 = vmatpush2.bf16.msra.mxu0 %v538
        %608 = vmatprep.subr.bf16.mxu0 0
        %609 = vmatpush2.bf16.msra.mxu0 %v537
        %610 = vmatprep.mubr.bf16.mxu0 %v438
        %611 = vmatmul.mubr.bf16.gmra.mxu0 %v437
        %v612 = vpop.f32.mrf.mxu0
        %v613 = vadd.f32 %v395, %v612
        %v614 = vpop.f32.mrf.mxu0
        %v615 = vpop.f32.mrf.mxu0
        %v616 = vadd.f32 %v395, %v615
        %v617 = vpop.f32.mrf.mxu0
        %618 = vmatprep.mubr.bf16.mxu0 %v441
        %619 = vmatmul.mubr.bf16.gmra.mxu0 %v440
        %v620 = vpop.f32.mrf.mxu0
        %v621 = vadd.f32 %v395, %v620
        %v622 = vpop.f32.mrf.mxu0
        %v623 = vpop.f32.mrf.mxu0
        %v624 = vadd.f32 %v395, %v623
        %v625 = vpop.f32.mrf.mxu0
        %626 = vmatprep.mubr.bf16.mxu0 %v444
        %627 = vmatmul.mubr.bf16.gmra.mxu0 %v443
        %v628 = vpop.f32.mrf.mxu0
        %v629 = vadd.f32 %v395, %v628
        %v630 = vpop.f32.mrf.mxu0
        %v631 = vpop.f32.mrf.mxu0
        %v632 = vadd.f32 %v395, %v631
        %v633 = vpop.f32.mrf.mxu0
        %634 = vmatprep.mubr.bf16.mxu0 %v447
        %635 = vmatmul.mubr.bf16.gmra.mxu0 %v446
        %v636 = vpop.f32.mrf.mxu0
        %v637 = vadd.f32 %v395, %v636
        %v638 = vpop.f32.mrf.mxu0
        %v639 = vpop.f32.mrf.mxu0
        %v640 = vadd.f32 %v395, %v639
        %v641 = vpop.f32.mrf.mxu0
        %642 = vdwg.mxu0
        %643 = vmatprep.subr.bf16.mxu0 0
        %644 = vmatpush1.bf16.msra.mxu0 0
        %645 = vmatprep.subr.bf16.mxu0 0
        %646 = vmatpush1.bf16.msra.mxu0 0
        %647 = vmatprep.subr.bf16.mxu0 0
        %648 = vmatpush1.bf16.msra.mxu0 0
        %649 = vmatprep.subr.bf16.mxu0 0
        %650 = vmatpush1.bf16.msra.mxu0 0
        %651 = vmatprep.subr.bf16.mxu0 0
        %652 = vmatpush1.bf16.msra.mxu0 0
        %653 = vmatprep.subr.bf16.mxu0 0
        %654 = vmatpush1.bf16.msra.mxu0 0
        %655 = vmatprep.subr.bf16.mxu0 0
        %656 = vmatpush1.bf16.msra.mxu0 %v546
        %657 = vmatprep.subr.bf16.mxu0 0
        %658 = vmatpush1.bf16.msra.mxu0 %v545
        %659 = vmatprep.subr.bf16.mxu0 0
        %660 = vmatpush2.bf16.msra.mxu0 0
        %661 = vmatprep.subr.bf16.mxu0 0
        %662 = vmatpush2.bf16.msra.mxu0 0
        %663 = vmatprep.subr.bf16.mxu0 0
        %664 = vmatpush2.bf16.msra.mxu0 0
        %665 = vmatprep.subr.bf16.mxu0 0
        %666 = vmatpush2.bf16.msra.mxu0 0
        %667 = vmatprep.subr.bf16.mxu0 0
        %668 = vmatpush2.bf16.msra.mxu0 0
        %669 = vmatprep.subr.bf16.mxu0 0
        %670 = vmatpush2.bf16.msra.mxu0 0
        %671 = vmatprep.subr.bf16.mxu0 0
        %672 = vmatpush2.bf16.msra.mxu0 0
        %673 = vmatprep.subr.bf16.mxu0 0
        %674 = vmatpush2.bf16.msra.mxu0 0
        %675 = vmatprep.mubr.bf16.mxu0 0
        %676 = vmatmul.mubr.bf16.gmra.mxu0 %v567
        %v677 = vpop.f32.mrf.mxu0
        %v678 = vadd.f32 %v613, %v677
        %v679 = vpop.f32.mrf.mxu0
        %v680 = vpop.f32.mrf.mxu0
        %v681 = vadd.f32 %v616, %v680
        %v682 = vpop.f32.mrf.mxu0
        %683 = vmatprep.mubr.bf16.mxu0 0
        %684 = vmatmul.mubr.bf16.gmra.mxu0 %v570
        %v685 = vpop.f32.mrf.mxu0
        %v686 = vadd.f32 %v621, %v685
        %v687 = vpop.f32.mrf.mxu0
        %v688 = vpop.f32.mrf.mxu0
        %v689 = vadd.f32 %v624, %v688
        %v690 = vpop.f32.mrf.mxu0
        %691 = vmatprep.mubr.bf16.mxu0 0
        %692 = vmatmul.mubr.bf16.gmra.mxu0 %v573
        %v693 = vpop.f32.mrf.mxu0
        %v694 = vadd.f32 %v629, %v693
        %v695 = vpop.f32.mrf.mxu0
        %v696 = vpop.f32.mrf.mxu0
        %v697 = vadd.f32 %v632, %v696
        %v698 = vpop.f32.mrf.mxu0
        %699 = vmatprep.mubr.bf16.mxu0 0
        %700 = vmatmul.mubr.bf16.gmra.mxu0 %v576
        %v701 = vpop.f32.mrf.mxu0
        %v702 = vadd.f32 %v637, %v701
        %v703 = vpop.f32.mrf.mxu0
        %v704 = vpop.f32.mrf.mxu0
        %v705 = vadd.f32 %v640, %v704
        %v706 = vpop.f32.mrf.mxu0
        %707 = vdwg.mxu0
        %v708 = vmax.f32 %v678, 0.0
        %v709 = vmax.f32 %v681, 0.0
        %v710 = vmax.f32 %v686, 0.0
        %v711 = vmax.f32 %v689, 0.0
        %v712 = vmax.f32 %v694, 0.0
        %v713 = vmax.f32 %v697, 0.0
        %v714 = vmax.f32 %v702, 0.0
        %v715 = vmax.f32 %v705, 0.0
        %v716 = vpack.c.bf16 %v709, %v708
        %v717 = vpack.c.bf16 %v711, %v710
        %v718 = vpack.c.bf16 %v713, %v712
        %v719 = vpack.c.bf16 %v715, %v714
        %v720 = vld [vmem:[%s3] sm:$0xf]
        %v721 = vld [vmem:[%s3 + $0x4] sm:$0xf]
        %v722 = vld [vmem:[%s3 + $0x8] sm:$0xf]
        %v723 = vld [vmem:[%s3 + $0xc] sm:$0xf]
        %v724 = vld [vmem:[%s3 + $0x10] sm:$0xf]
        %v725 = vld [vmem:[%s3 + $0x14] sm:$0xf]
        %v726 = vld [vmem:[%s3 + $0x18] sm:$0xf]
        %v727 = vld [vmem:[%s3 + $0x1c] sm:$0xf]
        %v728 = vld [vmem:[%s3 + $0x20] sm:$0xf]
        %v729 = vld [vmem:[%s3 + $0x24] sm:$0xf]
        %v730 = vld [vmem:[%s3 + $0x28] sm:$0xf]
        %v731 = vld [vmem:[%s3 + $0x2c] sm:$0xf]
        %v732 = vld [vmem:[%s3 + $0x30] sm:$0xf]
        %v733 = vld [vmem:[%s3 + $0x34] sm:$0xf]
        %v734 = vld [vmem:[%s3 + $0x38] sm:$0xf]
        %v735 = vld [vmem:[%s3 + $0x3c] sm:$0xf]
        %v736 = vld [vmem:[%s4] sm:$0x1]
        %v738 = vlaneseq
        %v739 = vshrl.u32 %v738, 7
        %v740 = vsub.s32 0, %v739
        %v741 = vrot.slane %v736, %v740
        %v759 = vunpack.c.l.b16 %v720
        %v760 = vunpack.c.l.b16 %v721
        %v761 = vunpack.c.l.b16 %v722
        %v762 = vunpack.c.l.b16 %v723
        %v763 = vunpack.c.l.b16 %v724
        %v764 = vunpack.c.l.b16 %v725
        %v765 = vunpack.c.l.b16 %v726
        %v766 = vunpack.c.l.b16 %v727
        %v767 = vunpack.c.l.b16 %v728
        %v768 = vunpack.c.l.b16 %v729
        %v769 = vunpack.c.l.b16 %v730
        %v770 = vunpack.c.l.b16 %v731
        %v771 = vunpack.c.l.b16 %v732
        %v772 = vunpack.c.l.b16 %v733
        %v773 = vunpack.c.l.b16 %v734
        %v774 = vunpack.c.l.b16 %v735
        %v775 = vpack.c.b16 %v760, %v759
        %v776 = vpack.c.b16 %v762, %v761
        %v777 = vpack.c.b16 %v764, %v763
        %v778 = vpack.c.b16 %v766, %v765
        %v779 = vpack.c.b16 %v768, %v767
        %v780 = vpack.c.b16 %v770, %v769
        %v781 = vpack.c.b16 %v772, %v771
        %v782 = vpack.c.b16 %v774, %v773
        %791 = vmatprep.subr.bf16.mxu0 0
        %792 = vmatpush1.bf16.msra.mxu0 %v782
        %793 = vmatprep.subr.bf16.mxu0 0
        %794 = vmatpush1.bf16.msra.mxu0 %v781
        %795 = vmatprep.subr.bf16.mxu0 0
        %796 = vmatpush1.bf16.msra.mxu0 %v780
        %797 = vmatprep.subr.bf16.mxu0 0
        %798 = vmatpush1.bf16.msra.mxu0 %v779
        %799 = vmatprep.subr.bf16.mxu0 0
        %800 = vmatpush1.bf16.msra.mxu0 %v778
        %801 = vmatprep.subr.bf16.mxu0 0
        %802 = vmatpush1.bf16.msra.mxu0 %v777
        %803 = vmatprep.subr.bf16.mxu0 0
        %804 = vmatpush1.bf16.msra.mxu0 %v776
        %805 = vmatprep.subr.bf16.mxu0 0
        %806 = vmatpush1.bf16.msra.mxu0 %v775
        %807 = vmatprep.subr.bf16.mxu0 0
        %808 = vmatpush2.bf16.msra.mxu0 0
        %809 = vmatprep.subr.bf16.mxu0 0
        %810 = vmatpush2.bf16.msra.mxu0 0
        %811 = vmatprep.subr.bf16.mxu0 0
        %812 = vmatpush2.bf16.msra.mxu0 0
        %813 = vmatprep.subr.bf16.mxu0 0
        %814 = vmatpush2.bf16.msra.mxu0 0
        %815 = vmatprep.subr.bf16.mxu0 0
        %816 = vmatpush2.bf16.msra.mxu0 0
        %817 = vmatprep.subr.bf16.mxu0 0
        %818 = vmatpush2.bf16.msra.mxu0 0
        %819 = vmatprep.subr.bf16.mxu0 0
        %820 = vmatpush2.bf16.msra.mxu0 0
        %821 = vmatprep.subr.bf16.mxu0 0
        %822 = vmatpush2.bf16.msra.mxu0 0
        %823 = vmatprep.mubr.bf16.mxu0 0
        %824 = vmatmul.mubr.bf16.gmra.mxu0 %v716
        %v825 = vpop.f32.mrf.mxu0
        %v826 = vadd.f32 %v741, %v825
        %v827 = vpop.f32.mrf.mxu0
        %v828 = vpop.f32.mrf.mxu0
        %v829 = vadd.f32 %v741, %v828
        %v830 = vpop.f32.mrf.mxu0
        %831 = vmatprep.mubr.bf16.mxu0 0
        %832 = vmatmul.mubr.bf16.gmra.mxu0 %v717
        %v833 = vpop.f32.mrf.mxu0
        %v834 = vadd.f32 %v741, %v833
        %v835 = vpop.f32.mrf.mxu0
        %v836 = vpop.f32.mrf.mxu0
        %v837 = vadd.f32 %v741, %v836
        %v838 = vpop.f32.mrf.mxu0
        %839 = vmatprep.mubr.bf16.mxu0 0
        %840 = vmatmul.mubr.bf16.gmra.mxu0 %v718
        %v841 = vpop.f32.mrf.mxu0
        %v842 = vadd.f32 %v741, %v841
        %v843 = vpop.f32.mrf.mxu0
        %v844 = vpop.f32.mrf.mxu0
        %v845 = vadd.f32 %v741, %v844
        %v846 = vpop.f32.mrf.mxu0
        %847 = vmatprep.mubr.bf16.mxu0 0
        %848 = vmatmul.mubr.bf16.gmra.mxu0 %v719
        %v849 = vpop.f32.mrf.mxu0
        %v850 = vadd.f32 %v741, %v849
        %v851 = vpop.f32.mrf.mxu0
        %v852 = vpop.f32.mrf.mxu0
        %v853 = vadd.f32 %v741, %v852
        %v854 = vpop.f32.mrf.mxu0
        %855 = vdwg.mxu0
        %v856 = vpack.c.bf16 %v829, %v826
        %v857 = vpack.c.bf16 %v837, %v834
        %v858 = vpack.c.bf16 %v845, %v842
        %v859 = vpack.c.bf16 %v853, %v850
        %v860 = vld [vmem:[%s5] sm:$0xf]
        %v861 = vld [vmem:[%s5 + $0x4] sm:$0xf]
        %v862 = vld [vmem:[%s5 + $0x8] sm:$0xf]
        %v863 = vld [vmem:[%s5 + $0xc] sm:$0xf]
        %v864 = vld [vmem:[%s5 + $0x10] sm:$0xf]
        %v865 = vld [vmem:[%s5 + $0x14] sm:$0xf]
        %v866 = vld [vmem:[%s5 + $0x18] sm:$0xf]
        %v867 = vld [vmem:[%s5 + $0x1c] sm:$0xf]
        %v868 = vld [vmem:[%s5 + $0x20] sm:$0xf]
        %v869 = vld [vmem:[%s5 + $0x24] sm:$0xf]
        %v870 = vld [vmem:[%s5 + $0x28] sm:$0xf]
        %v871 = vld [vmem:[%s5 + $0x2c] sm:$0xf]
        %v872 = vld [vmem:[%s5 + $0x30] sm:$0xf]
        %v873 = vld [vmem:[%s5 + $0x34] sm:$0xf]
        %v874 = vld [vmem:[%s5 + $0x38] sm:$0xf]
        %v875 = vld [vmem:[%s5 + $0x3c] sm:$0xf]
        %v876 = vld [vmem:[%s6] sm:$0x1]
        %v878 = vlaneseq
        %v879 = vshrl.u32 %v878, 7
        %v880 = vsub.s32 0, %v879
        %v881 = vrot.slane %v876, %v880
        %v899 = vunpack.c.l.b16 %v860
        %v900 = vunpack.c.l.b16 %v861
        %v901 = vunpack.c.l.b16 %v862
        %v902 = vunpack.c.l.b16 %v863
        %v903 = vunpack.c.l.b16 %v864
        %v904 = vunpack.c.l.b16 %v865
        %v905 = vunpack.c.l.b16 %v866
        %v906 = vunpack.c.l.b16 %v867
        %v907 = vunpack.c.l.b16 %v868
        %v908 = vunpack.c.l.b16 %v869
        %v909 = vunpack.c.l.b16 %v870
        %v910 = vunpack.c.l.b16 %v871
        %v911 = vunpack.c.l.b16 %v872
        %v912 = vunpack.c.l.b16 %v873
        %v913 = vunpack.c.l.b16 %v874
        %v914 = vunpack.c.l.b16 %v875
        %v915 = vpack.c.b16 %v900, %v899
        %v916 = vpack.c.b16 %v902, %v901
        %v917 = vpack.c.b16 %v904, %v903
        %v918 = vpack.c.b16 %v906, %v905
        %v919 = vpack.c.b16 %v908, %v907
        %v920 = vpack.c.b16 %v910, %v909
        %v921 = vpack.c.b16 %v912, %v911
        %v922 = vpack.c.b16 %v914, %v913
        %931 = vmatprep.subr.bf16.mxu0 0
        %932 = vmatpush1.bf16.msra.mxu0 %v922
        %933 = vmatprep.subr.bf16.mxu0 0
        %934 = vmatpush1.bf16.msra.mxu0 %v921
        %935 = vmatprep.subr.bf16.mxu0 0
        %936 = vmatpush1.bf16.msra.mxu0 %v920
        %937 = vmatprep.subr.bf16.mxu0 0
        %938 = vmatpush1.bf16.msra.mxu0 %v919
        %939 = vmatprep.subr.bf16.mxu0 0
        %940 = vmatpush1.bf16.msra.mxu0 %v918
        %941 = vmatprep.subr.bf16.mxu0 0
        %942 = vmatpush1.bf16.msra.mxu0 %v917
        %943 = vmatprep.subr.bf16.mxu0 0
        %944 = vmatpush1.bf16.msra.mxu0 %v916
        %945 = vmatprep.subr.bf16.mxu0 0
        %946 = vmatpush1.bf16.msra.mxu0 %v915
        %947 = vmatprep.subr.bf16.mxu0 0
        %948 = vmatpush2.bf16.msra.mxu0 0
        %949 = vmatprep.subr.bf16.mxu0 0
        %950 = vmatpush2.bf16.msra.mxu0 0
        %951 = vmatprep.subr.bf16.mxu0 0
        %952 = vmatpush2.bf16.msra.mxu0 0
        %953 = vmatprep.subr.bf16.mxu0 0
        %954 = vmatpush2.bf16.msra.mxu0 0
        %955 = vmatprep.subr.bf16.mxu0 0
        %956 = vmatpush2.bf16.msra.mxu0 0
        %957 = vmatprep.subr.bf16.mxu0 0
        %958 = vmatpush2.bf16.msra.mxu0 0
        %959 = vmatprep.subr.bf16.mxu0 0
        %960 = vmatpush2.bf16.msra.mxu0 0
        %961 = vmatprep.subr.bf16.mxu0 0
        %962 = vmatpush2.bf16.msra.mxu0 0
        %963 = vmatprep.mubr.bf16.mxu0 0
        %964 = vmatmul.mubr.bf16.gmra.mxu0 %v856
        %v965 = vpop.f32.mrf.mxu0
        %v966 = vadd.f32 %v881, %v965
        %v967 = vpop.f32.mrf.mxu0
        %v968 = vpop.f32.mrf.mxu0
        %v969 = vadd.f32 %v881, %v968
        %v970 = vpop.f32.mrf.mxu0
        %971 = vmatprep.mubr.bf16.mxu0 0
        %972 = vmatmul.mubr.bf16.gmra.mxu0 %v857
        %v973 = vpop.f32.mrf.mxu0
        %v974 = vadd.f32 %v881, %v973
        %v975 = vpop.f32.mrf.mxu0
        %v976 = vpop.f32.mrf.mxu0
        %v977 = vadd.f32 %v881, %v976
        %v978 = vpop.f32.mrf.mxu0
        %979 = vmatprep.mubr.bf16.mxu0 0
        %980 = vmatmul.mubr.bf16.gmra.mxu0 %v858
        %v981 = vpop.f32.mrf.mxu0
        %v982 = vadd.f32 %v881, %v981
        %v983 = vpop.f32.mrf.mxu0
        %v984 = vpop.f32.mrf.mxu0
        %v985 = vadd.f32 %v881, %v984
        %v986 = vpop.f32.mrf.mxu0
        %987 = vmatprep.mubr.bf16.mxu0 0
        %988 = vmatmul.mubr.bf16.gmra.mxu0 %v859
        %v989 = vpop.f32.mrf.mxu0
        %v990 = vadd.f32 %v881, %v989
        %v991 = vpop.f32.mrf.mxu0
        %v992 = vpop.f32.mrf.mxu0
        %v993 = vadd.f32 %v881, %v992
        %v994 = vpop.f32.mrf.mxu0
        %995 = vdwg.mxu0
        %v996 = vmax.f32 %v966, 0.0
        %v997 = vmax.f32 %v969, 0.0
        %v998 = vmax.f32 %v974, 0.0
        %v999 = vmax.f32 %v977, 0.0
        %v1000 = vmax.f32 %v982, 0.0
        %v1001 = vmax.f32 %v985, 0.0
        %v1002 = vmax.f32 %v990, 0.0
        %v1003 = vmax.f32 %v993, 0.0
        %v1004 = vpack.c.bf16 %v997, %v996
        %v1005 = vpack.c.bf16 %v999, %v998
        %v1006 = vpack.c.bf16 %v1001, %v1000
        %v1007 = vpack.c.bf16 %v1003, %v1002
        %v1008 = vld [vmem:[%s7] sm:$0xf]
        %v1009 = vld [vmem:[%s7 + $0x4] sm:$0xf]
        %v1010 = vld [vmem:[%s7 + $0x8] sm:$0xf]
        %v1011 = vld [vmem:[%s7 + $0xc] sm:$0xf]
        %v1012 = vld [vmem:[%s7 + $0x10] sm:$0xf]
        %v1013 = vld [vmem:[%s7 + $0x14] sm:$0xf]
        %v1014 = vld [vmem:[%s7 + $0x18] sm:$0xf]
        %v1015 = vld [vmem:[%s7 + $0x1c] sm:$0xf]
        %v1016 = vld [vmem:[%s7 + $0x20] sm:$0xf]
        %v1017 = vld [vmem:[%s7 + $0x24] sm:$0xf]
        %v1018 = vld [vmem:[%s7 + $0x28] sm:$0xf]
        %v1019 = vld [vmem:[%s7 + $0x2c] sm:$0xf]
        %v1020 = vld [vmem:[%s7 + $0x30] sm:$0xf]
        %v1021 = vld [vmem:[%s7 + $0x34] sm:$0xf]
        %v1022 = vld [vmem:[%s7 + $0x38] sm:$0xf]
        %v1023 = vld [vmem:[%s7 + $0x3c] sm:$0xf]
        %v1024 = vld [vmem:[%s8] sm:$0x1]
        %v1026 = vlaneseq
        %v1027 = vshrl.u32 %v1026, 7
        %v1028 = vsub.s32 0, %v1027
        %v1029 = vrot.slane %v1024, %v1028
        %v1047 = vunpack.c.l.b16 %v1008
        %v1048 = vunpack.c.l.b16 %v1009
        %v1049 = vunpack.c.l.b16 %v1010
        %v1050 = vunpack.c.l.b16 %v1011
        %v1051 = vunpack.c.l.b16 %v1012
        %v1052 = vunpack.c.l.b16 %v1013
        %v1053 = vunpack.c.l.b16 %v1014
        %v1054 = vunpack.c.l.b16 %v1015
        %v1055 = vunpack.c.l.b16 %v1016
        %v1056 = vunpack.c.l.b16 %v1017
        %v1057 = vunpack.c.l.b16 %v1018
        %v1058 = vunpack.c.l.b16 %v1019
        %v1059 = vunpack.c.l.b16 %v1020
        %v1060 = vunpack.c.l.b16 %v1021
        %v1061 = vunpack.c.l.b16 %v1022
        %v1062 = vunpack.c.l.b16 %v1023
        %v1063 = vpack.c.b16 %v1048, %v1047
        %v1064 = vpack.c.b16 %v1050, %v1049
        %v1065 = vpack.c.b16 %v1052, %v1051
        %v1066 = vpack.c.b16 %v1054, %v1053
        %v1067 = vpack.c.b16 %v1056, %v1055
        %v1068 = vpack.c.b16 %v1058, %v1057
        %v1069 = vpack.c.b16 %v1060, %v1059
        %v1070 = vpack.c.b16 %v1062, %v1061
        %1079 = vmatprep.subr.bf16.mxu0 0
        %1080 = vmatpush1.bf16.msra.mxu0 %v1070
        %1081 = vmatprep.subr.bf16.mxu0 0
        %1082 = vmatpush1.bf16.msra.mxu0 %v1069
        %1083 = vmatprep.subr.bf16.mxu0 0
        %1084 = vmatpush1.bf16.msra.mxu0 %v1068
        %1085 = vmatprep.subr.bf16.mxu0 0
        %1086 = vmatpush1.bf16.msra.mxu0 %v1067
        %1087 = vmatprep.subr.bf16.mxu0 0
        %1088 = vmatpush1.bf16.msra.mxu0 %v1066
        %1089 = vmatprep.subr.bf16.mxu0 0
        %1090 = vmatpush1.bf16.msra.mxu0 %v1065
        %1091 = vmatprep.subr.bf16.mxu0 0
        %1092 = vmatpush1.bf16.msra.mxu0 %v1064
        %1093 = vmatprep.subr.bf16.mxu0 0
        %1094 = vmatpush1.bf16.msra.mxu0 %v1063
        %1095 = vmatprep.subr.bf16.mxu0 0
        %1096 = vmatpush2.bf16.msra.mxu0 0
        %1097 = vmatprep.subr.bf16.mxu0 0
        %1098 = vmatpush2.bf16.msra.mxu0 0
        %1099 = vmatprep.subr.bf16.mxu0 0
        %1100 = vmatpush2.bf16.msra.mxu0 0
        %1101 = vmatprep.subr.bf16.mxu0 0
        %1102 = vmatpush2.bf16.msra.mxu0 0
        %1103 = vmatprep.subr.bf16.mxu0 0
        %1104 = vmatpush2.bf16.msra.mxu0 0
        %1105 = vmatprep.subr.bf16.mxu0 0
        %1106 = vmatpush2.bf16.msra.mxu0 0
        %1107 = vmatprep.subr.bf16.mxu0 0
        %1108 = vmatpush2.bf16.msra.mxu0 0
        %1109 = vmatprep.subr.bf16.mxu0 0
        %1110 = vmatpush2.bf16.msra.mxu0 0
        %1111 = vmatprep.mubr.bf16.mxu0 0
        %1112 = vmatmul.mubr.bf16.gmra.mxu0 %v1004
        %v1113 = vpop.f32.mrf.mxu0
        %v1114 = vadd.f32 %v1029, %v1113
        %v1115 = vpop.f32.mrf.mxu0
        %v1116 = vpop.f32.mrf.mxu0
        %v1117 = vadd.f32 %v1029, %v1116
        %v1118 = vpop.f32.mrf.mxu0
        %1119 = vmatprep.mubr.bf16.mxu0 0
        %1120 = vmatmul.mubr.bf16.gmra.mxu0 %v1005
        %v1121 = vpop.f32.mrf.mxu0
        %v1122 = vadd.f32 %v1029, %v1121
        %v1123 = vpop.f32.mrf.mxu0
        %v1124 = vpop.f32.mrf.mxu0
        %v1125 = vadd.f32 %v1029, %v1124
        %v1126 = vpop.f32.mrf.mxu0
        %1127 = vmatprep.mubr.bf16.mxu0 0
        %1128 = vmatmul.mubr.bf16.gmra.mxu0 %v1006
        %v1129 = vpop.f32.mrf.mxu0
        %v1130 = vadd.f32 %v1029, %v1129
        %v1131 = vpop.f32.mrf.mxu0
        %v1132 = vpop.f32.mrf.mxu0
        %v1133 = vadd.f32 %v1029, %v1132
        %v1134 = vpop.f32.mrf.mxu0
        %1135 = vmatprep.mubr.bf16.mxu0 0
        %1136 = vmatmul.mubr.bf16.gmra.mxu0 %v1007
        %v1137 = vpop.f32.mrf.mxu0
        %v1138 = vadd.f32 %v1029, %v1137
        %v1139 = vpop.f32.mrf.mxu0
        %v1140 = vpop.f32.mrf.mxu0
        %v1141 = vadd.f32 %v1029, %v1140
        %v1142 = vpop.f32.mrf.mxu0
        %1143 = vdwg.mxu0
        %1144 = vst [vmem:[%s328] sm:$0xff] %v1114
        %1145 = vst [vmem:[%s328 + $0x8] sm:$0xff] %v1117
        %1146 = vst [vmem:[%s328 + $0x10] sm:$0xff] %v1122
        %1147 = vst [vmem:[%s328 + $0x18] sm:$0xff] %v1125
        %1148 = vst [vmem:[%s328 + $0x20] sm:$0xff] %v1130
        %1149 = vst [vmem:[%s328 + $0x28] sm:$0xff] %v1133
        %1150 = vst [vmem:[%s328 + $0x30] sm:$0xff] %v1138
        %1151 = vst [vmem:[%s328 + $0x38] sm:$0xff] %v1141
        %s1152 = sand.u32 %s225, 1
        %s1153 = scalar_lea.sflag [#allocation3], %s1152
        %s1154 = sand.u32 %s225, 1
        %s1155 = smul.addr %s1154, 64
        %s1156 = scalar_lea.vmem [#allocation2], %s1155
        // Predicated region
        $region57: #{tpu_custom_call.1} parent=55 // pred_check
          %p1157 = pneg %p235
        $region58: #{tpu_custom_call.1} parent=55 // pred_check_branch
          %1159 = sbr.rel (%p1157) target = $region60
        $region59: #{tpu_custom_call.1} parent=55 // pred_region
          %s1160 = smul.u32 8, %s23
          %s1162 = ssub.s32 1024, 1024
          %1163 = vsyncadd %s1153, %s1162
          %s1164 = smul.addr %s1160, 128
          %s1165 = scalar_lea.hbm %s9, %s1164
          %s1166 = sshll.u32 %s1156, 4
          %s1167 = int_to_ptr.vmem [resolvable:$true] %s1166
          %1172 = dma.vmem_to_hbm [thread:$0]  %s1167, 1024, %s1165, %s1153, 128, 128, 8
        $region60: #{tpu_custom_call.1} parent=55 // pred_fallthru
          _
      $region56: #{tpu_custom_call.1} parent=5 // pred_fallthru
        _
      %p1173 = scmp.le.s32.totalorder 2, %s18
      // Predicated region
      $region61: #{tpu_custom_call.1} parent=5 // pred_check
        %p1174 = pneg %p1173
      $region62: #{tpu_custom_call.1} parent=5 // pred_check_branch
        %1176 = sbr.rel (%p1174) target = $region64
      $region63: #{tpu_custom_call.1} parent=5 // pred_region
        %s1177 = ssub.s32 %s18, 2
        // Predicated region
        $region65: #{tpu_custom_call.1} parent=63 // pred_check
          %p1178 = pneg %p241
        $region66: #{tpu_custom_call.1} parent=63 // pred_check_branch
          %1180 = sbr.rel (%p1178) target = $region68
        $region67: #{tpu_custom_call.1} parent=63 // pred_region
          %s1181 = sand.u32 %s226, 1
          %s1182 = scalar_lea.sflag [#allocation3], %s1181
          %s1183 = sand.u32 %s226, 1
          %s1184 = smul.addr %s1183, 64
          %s1185 = scalar_lea.vmem [#allocation2], %s1184
          %1186 = dma.done %s1182, 1024
        $region68: #{tpu_custom_call.1} parent=63 // pred_fallthru
          _
      $region64: #{tpu_custom_call.1} parent=5 // pred_fallthru
        _
    $region6: #{tpu_custom_call.1} parent=1 // loop_footer
      %s22 = sadd.s32 1, %s18
    $region7: #{tpu_custom_call.1} parent=1 // loop_footer_branch
      %17 = sbr.rel target = $region3
    $region8: #{tpu_custom_call.1} parent=1 // loop_exit
      _
    %1187 = vsyncpa [#allocation3], 1
    %s1188 = scalar_lea.sflag [#allocation3], 1
    %1189 = vsyncpa %s1188, 1

// kernel: tpu_custom_call.1
$region0: #{tpu_custom_call.1}
  #allocation0 [shape = 'u32[]', space=smem, size = 0x4, offset = 0x4, fixed_abs, tag = 'smem constant byte address 0x4 - core index']
  #allocation1 [shape = 'u32[144,128]{1,0:T(1,128)}', space=vmem, size = 0x12000, scoped, tag = 'internal scratch']
  %s0 = inlined_call_operand.vmem [shape: bf16[128,288], index: 0, kind: input, shape index: {}]
  %s1 = inlined_call_operand.vmem [shape: bf16[288,128], index: 1, kind: input, shape index: {}]
  %s2 = inlined_call_operand.vmem [shape: f32[1,128], index: 2, kind: input, shape index: {}]
  %s3 = inlined_call_operand.vmem [shape: bf16[128,128], index: 3, kind: input, shape index: {}]
  %s4 = inlined_call_operand.vmem [shape: f32[1,128], index: 4, kind: input, shape index: {}]
  %s5 = inlined_call_operand.vmem [shape: bf16[128,128], index: 5, kind: input, shape index: {}]
  %s6 = inlined_call_operand.vmem [shape: f32[1,128], index: 6, kind: input, shape index: {}]
  %s7 = inlined_call_operand.vmem [shape: bf16[128,128], index: 7, kind: input, shape index: {}]
  %s8 = inlined_call_operand.vmem [shape: f32[1,128], index: 8, kind: input, shape index: {}]
  %s9 = inlined_call_operand.hbm [shape: f32[128,128], index: 9, kind: output, shape index: {}]
  %s10 = sld [smem:[#allocation0]]
  $region69: #{tpu_custom_call.1} parent=0
    _
  %s12 = ssub.s32 1, %s10
  %s13 = scalar_select 0, %s12, %s10
  $region1: #{tpu_custom_call.1} parent=0
    #allocation2 [shape = 'u8[65536]{0}', space=vmem, size = 0x10000, scoped, tag = 'output window, operand 0']
    #allocation3 [shape = 's32[2]{0}', space=sflag, size = 0x8, scoped, tag = 'scoped memory for tpu_custom_call.1']
    %14 = vsyncpa [#allocation3], 0
    %s15 = scalar_lea.sflag [#allocation3], 1
    %16 = vsyncpa %s15, 0
    loop: start=0, step=1, limit=4
    $region2: #{tpu_custom_call.1} parent=1 // loop_pre_header
      _
    $region3: #{tpu_custom_call.1} parent=1 // loop_header
      %s18 = sphi 0, %s22
      %p19 = scmp.ge.s32.totalorder %s18, 4
      %s28 = sphi 0, %s30
      %s31 = sphi 0, %s28
      %s32 = sphi 0, %s31
      %s48 = sphi 0, %s32
      %s52 = sphi 0, %s52
      %s54 = sphi 0, %s52
      %s55 = sphi 0, %s54
      %s69 = sphi 0, %s55
      %s73 = sphi 0, %s73
      %s75 = sphi 0, %s73
      %s76 = sphi 0, %s75
      %s90 = sphi 0, %s76
      %s94 = sphi 0, %s94
      %s96 = sphi 0, %s94
      %s97 = sphi 0, %s96
      %s111 = sphi 0, %s97
      %s115 = sphi 0, %s115
      %s117 = sphi 0, %s115
      %s118 = sphi 0, %s117
      %s132 = sphi 0, %s118
      %s136 = sphi 0, %s136
      %s138 = sphi 0, %s136
      %s139 = sphi 0, %s138
      %s153 = sphi 0, %s139
      %s157 = sphi 0, %s157
      %s159 = sphi 0, %s157
      %s160 = sphi 0, %s159
      %s174 = sphi 0, %s160
      %s178 = sphi 0, %s178
      %s180 = sphi 0, %s178
      %s181 = sphi 0, %s180
      %s195 = sphi 0, %s181
      %s199 = sphi 0, %s199
      %s201 = sphi 0, %s199
      %s202 = sphi 0, %s201
      %s216 = sphi 0, %s202
      %s222 = sphi 0, %s224
      %s225 = sphi 0, %s222
      %s226 = sphi 0, %s225
      %s242 = sphi 0, %s226
    $region4: #{tpu_custom_call.1} parent=1 // loop_header_branch
      %21 = sbr.rel (%p19) target = $region8
    $region5: #{tpu_custom_call.1} parent=1 // loop_body
      %s23 = ssub.s32 %s18, 1
      %s24 = ssub.s32 %s18, 2
      %s25 = sadd.s32 %s18, 1
      %s26 = ssub.s32 %s18, %s25
      %p27 = scmp.eq.s32.totalorder %s26, 0
      %s29 = sadd.s32 %s28, 1
      %s30 = scalar_select %p27, %s28, %s29
      %p33 = pneg %p27
      %p34 = scmp.eq.s32.totalorder %s18, 1
      %p35 = por %p33, %p34
      %p36 = scmp.ne.s32.totalorder %s28, %s31
      %p37 = scmp.eq.s32.totalorder %s18, 0
      %p38 = por %p36, %p37
      %p39 = scmp.ne.s32.totalorder %s28, %s31
      %p40 = scmp.eq.s32.totalorder %s23, 1
      %p41 = por %p39, %p40
      %p42 = scmp.ne.s32.totalorder %s31, %s32
      %p43 = scmp.eq.s32.totalorder %s23, 0
      %p44 = por %p42, %p43
      %p45 = scmp.ne.s32.totalorder %s31, %s32
      %p46 = scmp.eq.s32.totalorder %s24, 1
      %p47 = por %p45, %p46
      %p49 = scmp.ne.s32.totalorder %s32, %s48
      %p50 = scmp.eq.s32.totalorder %s24, 0
      %p51 = por %p49, %p50
      %s53 = sadd.s32 %s52, 1
      %p56 = scmp.eq.s32.totalorder %s18, 1
      %p57 = scmp.ne.s32.totalorder %s52, %s54
      %p58 = scmp.eq.s32.totalorder %s18, 0
      %p59 = por %p57, %p58
      %p60 = scmp.ne.s32.totalorder %s52, %s54
      %p61 = scmp.eq.s32.totalorder %s23, 1
      %p62 = por %p60, %p61
      %p63 = scmp.ne.s32.totalorder %s54, %s55
      %p64 = scmp.eq.s32.totalorder %s23, 0
      %p65 = por %p63, %p64
      %p66 = scmp.ne.s32.totalorder %s54, %s55
      %p67 = scmp.eq.s32.totalorder %s24, 1
      %p68 = por %p66, %p67
      %p70 = scmp.ne.s32.totalorder %s55, %s69
      %p71 = scmp.eq.s32.totalorder %s24, 0
      %p72 = por %p70, %p71
      %s74 = sadd.s32 %s73, 1
      %p77 = scmp.eq.s32.totalorder %s18, 1
      %p78 = scmp.ne.s32.totalorder %s73, %s75
      %p79 = scmp.eq.s32.totalorder %s18, 0
      %p80 = por %p78, %p79
      %p81 = scmp.ne.s32.totalorder %s73, %s75
      %p82 = scmp.eq.s32.totalorder %s23, 1
      %p83 = por %p81, %p82
      %p84 = scmp.ne.s32.totalorder %s75, %s76
      %p85 = scmp.eq.s32.totalorder %s23, 0
      %p86 = por %p84, %p85
      %p87 = scmp.ne.s32.totalorder %s75, %s76
      %p88 = scmp.eq.s32.totalorder %s24, 1
      %p89 = por %p87, %p88
      %p91 = scmp.ne.s32.totalorder %s76, %s90
      %p92 = scmp.eq.s32.totalorder %s24, 0
      %p93 = por %p91, %p92
      %s95 = sadd.s32 %s94, 1
      %p98 = scmp.eq.s32.totalorder %s18, 1
      %p99 = scmp.ne.s32.totalorder %s94, %s96
      %p100 = scmp.eq.s32.totalorder %s18, 0
      %p101 = por %p99, %p100
      %p102 = scmp.ne.s32.totalorder %s94, %s96
      %p103 = scmp.eq.s32.totalorder %s23, 1
      %p104 = por %p102, %p103
      %p105 = scmp.ne.s32.totalorder %s96, %s97
      %p106 = scmp.eq.s32.totalorder %s23, 0
      %p107 = por %p105, %p106
      %p108 = scmp.ne.s32.totalorder %s96, %s97
      %p109 = scmp.eq.s32.totalorder %s24, 1
      %p110 = por %p108, %p109
      %p112 = scmp.ne.s32.totalorder %s97, %s111
      %p113 = scmp.eq.s32.totalorder %s24, 0
      %p114 = por %p112, %p113
      %s116 = sadd.s32 %s115, 1
      %p119 = scmp.eq.s32.totalorder %s18, 1
      %p120 = scmp.ne.s32.totalorder %s115, %s117
      %p121 = scmp.eq.s32.totalorder %s18, 0
      %p122 = por %p120, %p121
      %p123 = scmp.ne.s32.totalorder %s115, %s117
      %p124 = scmp.eq.s32.totalorder %s23, 1
      %p125 = por %p123, %p124
      %p126 = scmp.ne.s32.totalorder %s117, %s118
      %p127 = scmp.eq.s32.totalorder %s23, 0
      %p128 = por %p126, %p127
      %p129 = scmp.ne.s32.totalorder %s117, %s118
      %p130 = scmp.eq.s32.totalorder %s24, 1
      %p131 = por %p129, %p130
      %p133 = scmp.ne.s32.totalorder %s118, %s132
      %p134 = scmp.eq.s32.totalorder %s24, 0
      %p135 = por %p133, %p134
      %s137 = sadd.s32 %s136, 1
      %p140 = scmp.eq.s32.totalorder %s18, 1
      %p141 = scmp.ne.s32.totalorder %s136, %s138
      %p142 = scmp.eq.s32.totalorder %s18, 0
      %p143 = por %p141, %p142
      %p144 = scmp.ne.s32.totalorder %s136, %s138
      %p145 = scmp.eq.s32.totalorder %s23, 1
      %p146 = por %p144, %p145
      %p147 = scmp.ne.s32.totalorder %s138, %s139
      %p148 = scmp.eq.s32.totalorder %s23, 0
      %p149 = por %p147, %p148
      %p150 = scmp.ne.s32.totalorder %s138, %s139
      %p151 = scmp.eq.s32.totalorder %s24, 1
      %p152 = por %p150, %p151
      %p154 = scmp.ne.s32.totalorder %s139, %s153
      %p155 = scmp.eq.s32.totalorder %s24, 0
      %p156 = por %p154, %p155
      %s158 = sadd.s32 %s157, 1
      %p161 = scmp.eq.s32.totalorder %s18, 1
      %p162 = scmp.ne.s32.totalorder %s157, %s159
      %p163 = scmp.eq.s32.totalorder %s18, 0
      %p164 = por %p162, %p163
      %p165 = scmp.ne.s32.totalorder %s157, %s159
      %p166 = scmp.eq.s32.totalorder %s23, 1
      %p167 = por %p165, %p166
      %p168 = scmp.ne.s32.totalorder %s159, %s160
      %p169 = scmp.eq.s32.totalorder %s23, 0
      %p170 = por %p168, %p169
      %p171 = scmp.ne.s32.totalorder %s159, %s160
      %p172 = scmp.eq.s32.totalorder %s24, 1
      %p173 = por %p171, %p172
      %p175 = scmp.ne.s32.totalorder %s160, %s174
      %p176 = scmp.eq.s32.totalorder %s24, 0
      %p177 = por %p175, %p176
      %s179 = sadd.s32 %s178, 1
      %p182 = scmp.eq.s32.totalorder %s18, 1
      %p183 = scmp.ne.s32.totalorder %s178, %s180
      %p184 = scmp.eq.s32.totalorder %s18, 0
      %p185 = por %p183, %p184
      %p186 = scmp.ne.s32.totalorder %s178, %s180
      %p187 = scmp.eq.s32.totalorder %s23, 1
      %p188 = por %p186, %p187
      %p189 = scmp.ne.s32.totalorder %s180, %s181
      %p190 = scmp.eq.s32.totalorder %s23, 0
      %p191 = por %p189, %p190
      %p192 = scmp.ne.s32.totalorder %s180, %s181
      %p193 = scmp.eq.s32.totalorder %s24, 1
      %p194 = por %p192, %p193
      %p196 = scmp.ne.s32.totalorder %s181, %s195
      %p197 = scmp.eq.s32.totalorder %s24, 0
      %p198 = por %p196, %p197
      %s200 = sadd.s32 %s199, 1
      %p203 = scmp.eq.s32.totalorder %s18, 1
      %p204 = scmp.ne.s32.totalorder %s199, %s201
      %p205 = scmp.eq.s32.totalorder %s18, 0
      %p206 = por %p204, %p205
      %p207 = scmp.ne.s32.totalorder %s199, %s201
      %p208 = scmp.eq.s32.totalorder %s23, 1
      %p209 = por %p207, %p208
      %p210 = scmp.ne.s32.totalorder %s201, %s202
      %p211 = scmp.eq.s32.totalorder %s23, 0
      %p212 = por %p210, %p211
      %p213 = scmp.ne.s32.totalorder %s201, %s202
      %p214 = scmp.eq.s32.totalorder %s24, 1
      %p215 = por %p213, %p214
      %p217 = scmp.ne.s32.totalorder %s202, %s216
      %p218 = scmp.eq.s32.totalorder %s24, 0
      %p219 = por %p217, %p218
      %s220 = ssub.s32 %s18, %s25
      %p221 = scmp.eq.s32.totalorder %s220, 0
      %s223 = sadd.s32 %s222, 1
      %s224 = scalar_select %p221, %s222, %s223
      %p227 = pneg %p221
      %p228 = scmp.eq.s32.totalorder %s18, 1
      %p229 = por %p227, %p228
      %p230 = scmp.ne.s32.totalorder %s222, %s225
      %p231 = scmp.eq.s32.totalorder %s18, 0
      %p232 = por %p230, %p231
      %p233 = scmp.ne.s32.totalorder %s222, %s225
      %p234 = scmp.eq.s32.totalorder %s23, 1
      %p235 = por %p233, %p234
      %p236 = scmp.ne.s32.totalorder %s225, %s226
      %p237 = scmp.eq.s32.totalorder %s23, 0
      %p238 = por %p236, %p237
      %p239 = scmp.ne.s32.totalorder %s225, %s226
      %p240 = scmp.eq.s32.totalorder %s24, 1
      %p241 = por %p239, %p240
      %p243 = scmp.ne.s32.totalorder %s226, %s242
      %p244 = scmp.eq.s32.totalorder %s24, 0
      %p245 = por %p243, %p244
      %p246 = scmp.le.s32.totalorder 1, %s18
      %p247 = scmp.lt.s32.totalorder %s18, 3
      %p248 = pnand %p246, %p247
      %p249 = pneg %p248
      // Predicated region
      $region9: #{tpu_custom_call.1} parent=5 // pred_check
        _
      $region10: #{tpu_custom_call.1} parent=5 // pred_check_branch
        %251 = sbr.rel (%p248) target = $region12
      $region11: #{tpu_custom_call.1} parent=5 // pred_region
        %s252 = ssub.s32 %s18, 1
        // Predicated region
        $region13: #{tpu_custom_call.1} parent=11 // pred_check
          %p253 = pneg %p65
        $region14: #{tpu_custom_call.1} parent=11 // pred_check_branch
          %255 = sbr.rel (%p253) target = $region16
        $region15: #{tpu_custom_call.1} parent=11 // pred_region
          _
        $region16: #{tpu_custom_call.1} parent=11 // pred_fallthru
          _
        // Predicated region
        $region17: #{tpu_custom_call.1} parent=11 // pred_check
          %p256 = pneg %p86
        $region18: #{tpu_custom_call.1} parent=11 // pred_check_branch
          %258 = sbr.rel (%p256) target = $region20
        $region19: #{tpu_custom_call.1} parent=11 // pred_region
          _
        $region20: #{tpu_custom_call.1} parent=11 // pred_fallthru
          _
        // Predicated region
        $region21: #{tpu_custom_call.1} parent=11 // pred_check
          %p259 = pneg %p107
        $region22: #{tpu_custom_call.1} parent=11 // pred_check_branch
          %261 = sbr.rel (%p259) target = $region24
        $region23: #{tpu_custom_call.1} parent=11 // pred_region
          _
        $region24: #{tpu_custom_call.1} parent=11 // pred_fallthru
          _
        // Predicated region
        $region25: #{tpu_custom_call.1} parent=11 // pred_check
          %p262 = pneg %p128
        $region26: #{tpu_custom_call.1} parent=11 // pred_check_branch
          %264 = sbr.rel (%p262) target = $region28
        $region27: #{tpu_custom_call.1} parent=11 // pred_region
          _
        $region28: #{tpu_custom_call.1} parent=11 // pred_fallthru
          _
        // Predicated region
        $region29: #{tpu_custom_call.1} parent=11 // pred_check
          %p265 = pneg %p149
        $region30: #{tpu_custom_call.1} parent=11 // pred_check_branch
          %267 = sbr.rel (%p265) target = $region32
        $region31: #{tpu_custom_call.1} parent=11 // pred_region
          _
        $region32: #{tpu_custom_call.1} parent=11 // pred_fallthru
          _
        // Predicated region
        $region33: #{tpu_custom_call.1} parent=11 // pred_check
          %p268 = pneg %p170
        $region34: #{tpu_custom_call.1} parent=11 // pred_check_branch
          %270 = sbr.rel (%p268) target = $region36
        $region35: #{tpu_custom_call.1} parent=11 // pred_region
          _
        $region36: #{tpu_custom_call.1} parent=11 // pred_fallthru
          _
        // Predicated region
        $region37: #{tpu_custom_call.1} parent=11 // pred_check
          %p271 = pneg %p191
        $region38: #{tpu_custom_call.1} parent=11 // pred_check_branch
          %273 = sbr.rel (%p271) target = $region40
        $region39: #{tpu_custom_call.1} parent=11 // pred_region
          _
        $region40: #{tpu_custom_call.1} parent=11 // pred_fallthru
          _
        // Predicated region
        $region41: #{tpu_custom_call.1} parent=11 // pred_check
          %p274 = pneg %p212
        $region42: #{tpu_custom_call.1} parent=11 // pred_check_branch
          %276 = sbr.rel (%p274) target = $region44
        $region43: #{tpu_custom_call.1} parent=11 // pred_region
          _
        $region44: #{tpu_custom_call.1} parent=11 // pred_fallthru
          _
      $region12: #{tpu_custom_call.1} parent=5 // pred_fallthru
        _
      %p277 = scmp.lt.s32.totalorder %s18, 2
      // Predicated region
      $region45: #{tpu_custom_call.1} parent=5 // pred_check
        %p278 = pneg %p277
      $region46: #{tpu_custom_call.1} parent=5 // pred_check_branch
        %280 = sbr.rel (%p278) target = $region48
      $region47: #{tpu_custom_call.1} parent=5 // pred_region
        // Predicated region
        $region49: #{tpu_custom_call.1} parent=47 // pred_check
          %p281 = pneg %p38
        $region50: #{tpu_custom_call.1} parent=47 // pred_check_branch
          %283 = sbr.rel (%p281) target = $region52
        $region51: #{tpu_custom_call.1} parent=47 // pred_region
          %s284 = smul.u32 8, %s18
          %p285 = scmp.lt.s32.totalorder %s284, 15
          %s286 = scalar_select %p285, %s284, 15
          %s287 = smul.addr %s286, 3
          %s288 = smul.addr %s287, 4
          %s289 = scalar_lea.vmem %s0, %s288
          %s290 = smul.u32 8, %s18
        $region52: #{tpu_custom_call.1} parent=47 // pred_fallthru
          _
      $region48: #{tpu_custom_call.1} parent=5 // pred_fallthru
        _
      %p291 = scmp.le.s32.totalorder 1, %s18
      %p292 = scmp.lt.s32.totalorder %s18, 3
      %p293 = pnand %p291, %p292
      %p294 = pneg %p293
      // Predicated region
      $region53: #{tpu_custom_call.1} parent=5 // pred_check
        _
      $region54: #{tpu_custom_call.1} parent=5 // pred_check_branch
        %296 = sbr.rel (%p293) target = $region56
      $region55: #{tpu_custom_call.1} parent=5 // pred_region
        %s297 = ssub.s32 %s18, 1
        %s298 = smul.u32 8, %s23
        %p299 = scmp.lt.s32.totalorder %s298, 15
        %s300 = scalar_select %p299, %s298, 15
        %s301 = smul.addr %s300, 3
        %s302 = smul.addr %s301, 4
        %s303 = scalar_lea.vmem %s0, %s302
        %p304 = pneg %p44
        %p305 = pneg %p41
        %p306 = pneg %p65
        %p307 = pneg %p62
        %p308 = pneg %p86
        %p309 = pneg %p83
        %p310 = pneg %p107
        %p311 = pneg %p104
        %p312 = pneg %p128
        %p313 = pneg %p125
        %p314 = pneg %p149
        %p315 = pneg %p146
        %p316 = pneg %p170
        %p317 = pneg %p167
        %p318 = pneg %p191
        %p319 = pneg %p188
        %p320 = pneg %p212
        %p321 = pneg %p209
        %p322 = pneg %p238
        %p323 = pneg %p235
        %s324 = sand.u32 %s225, 1
        %s325 = scalar_lea.sflag [#allocation3], %s324
        %s326 = sand.u32 %s225, 1
        %s327 = smul.addr %s326, 64
        %s328 = scalar_lea.vmem [#allocation2], %s327
        %s329 = smul.u32 8, %s23
        %p330 = scmp.lt.s32.totalorder %s329, 15
        %s331 = scalar_select %p330, %s329, 15
        %s332 = smul.addr %s331, 3
        %s333 = smul.addr %s332, 4
        %s334 = scalar_lea.vmem %s0, %s333
        %s335 = smul.u32 8, %s23
        %s336 = smul.u32 8, %s23
        %v338 = vld [vmem:[%s334] sm:$0xff]
        %v339 = vld [vmem:[%s334 + $0x8] sm:$0xf]
        %v340 = vld [vmem:[%s334 + $0xc] sm:$0xff]
        %v341 = vld [vmem:[%s334 + $0x14] sm:$0xf]
        %v342 = vld [vmem:[%s334 + $0x18] sm:$0xff]
        %v343 = vld [vmem:[%s334 + $0x20] sm:$0xf]
        %v344 = vld [vmem:[%s334 + $0x24] sm:$0xff]
        %v345 = vld [vmem:[%s334 + $0x2c] sm:$0xf]
        %v346 = vld [vmem:[%s334 + $0x30] sm:$0xff]
        %v347 = vld [vmem:[%s334 + $0x38] sm:$0xf]
        %v348 = vld [vmem:[%s334 + $0x3c] sm:$0xff]
        %v349 = vld [vmem:[%s334 + $0x44] sm:$0xf]
        %v350 = vld [vmem:[%s334 + $0x48] sm:$0xff]
        %v351 = vld [vmem:[%s334 + $0x50] sm:$0xf]
        %v352 = vld [vmem:[%s334 + $0x54] sm:$0xff]
        %v353 = vld [vmem:[%s334 + $0x5c] sm:$0xf]
        %v354 = vld [vmem:[%s1] sm:$0xf]
        %v355 = vld [vmem:[%s1 + $0x4] sm:$0xf]
        %v356 = vld [vmem:[%s1 + $0x8] sm:$0xf]
        %v357 = vld [vmem:[%s1 + $0xc] sm:$0xf]
        %v358 = vld [vmem:[%s1 + $0x10] sm:$0xf]
        %v359 = vld [vmem:[%s1 + $0x14] sm:$0xf]
        %v360 = vld [vmem:[%s1 + $0x18] sm:$0xf]
        %v361 = vld [vmem:[%s1 + $0x1c] sm:$0xf]
        %v362 = vld [vmem:[%s1 + $0x20] sm:$0xf]
        %v363 = vld [vmem:[%s1 + $0x24] sm:$0xf]
        %v364 = vld [vmem:[%s1 + $0x28] sm:$0xf]
        %v365 = vld [vmem:[%s1 + $0x2c] sm:$0xf]
        %v366 = vld [vmem:[%s1 + $0x30] sm:$0xf]
        %v367 = vld [vmem:[%s1 + $0x34] sm:$0xf]
        %v368 = vld [vmem:[%s1 + $0x38] sm:$0xf]
        %v369 = vld [vmem:[%s1 + $0x3c] sm:$0xf]
        %v370 = vld [vmem:[%s1 + $0x40] sm:$0xf]
        %v371 = vld [vmem:[%s1 + $0x44] sm:$0xf]
        %v372 = vld [vmem:[%s1 + $0x48] sm:$0xf]
        %v373 = vld [vmem:[%s1 + $0x4c] sm:$0xf]
        %v374 = vld [vmem:[%s1 + $0x50] sm:$0xf]
        %v375 = vld [vmem:[%s1 + $0x54] sm:$0xf]
        %v376 = vld [vmem:[%s1 + $0x58] sm:$0xf]
        %v377 = vld [vmem:[%s1 + $0x5c] sm:$0xf]
        %v378 = vld [vmem:[%s1 + $0x60] sm:$0xf]
        %v379 = vld [vmem:[%s1 + $0x64] sm:$0xf]
        %v380 = vld [vmem:[%s1 + $0x68] sm:$0xf]
        %v381 = vld [vmem:[%s1 + $0x6c] sm:$0xf]
        %v382 = vld [vmem:[%s1 + $0x70] sm:$0xf]
        %v383 = vld [vmem:[%s1 + $0x74] sm:$0xf]
        %v384 = vld [vmem:[%s1 + $0x78] sm:$0xf]
        %v385 = vld [vmem:[%s1 + $0x7c] sm:$0xf]
        %v386 = vld [vmem:[%s1 + $0x80] sm:$0xf]
        %v387 = vld [vmem:[%s1 + $0x84] sm:$0xf]
        %v388 = vld [vmem:[%s1 + $0x88] sm:$0xf]
        %v389 = vld [vmem:[%s1 + $0x8c] sm:$0xf]
        %v390 = vld [vmem:[%s2] sm:$0x1]
        %v392 = vlaneseq
        %v393 = vshrl.u32 %v392, 7
        %v394 = vsub.s32 0, %v393
        %v395 = vrot.slane %v390, %v394
        %v413 = vunpack.c.l.b16 %v338
        %v414 = vunpack.c.h.b16 %v338
        %v415 = vunpack.c.l.b16 %v339
        %v416 = vunpack.c.l.b16 %v340
        %v417 = vunpack.c.h.b16 %v340
        %v418 = vunpack.c.l.b16 %v341
        %v419 = vunpack.c.l.b16 %v342
        %v420 = vunpack.c.h.b16 %v342
        %v421 = vunpack.c.l.b16 %v343
        %v422 = vunpack.c.l.b16 %v344
        %v423 = vunpack.c.h.b16 %v344
        %v424 = vunpack.c.l.b16 %v345
        %v425 = vunpack.c.l.b16 %v346
        %v426 = vunpack.c.h.b16 %v346
        %v427 = vunpack.c.l.b16 %v347
        %v428 = vunpack.c.l.b16 %v348
        %v429 = vunpack.c.h.b16 %v348
        %v430 = vunpack.c.l.b16 %v349
        %v431 = vunpack.c.l.b16 %v350
        %v432 = vunpack.c.h.b16 %v350
        %v433 = vunpack.c.l.b16 %v351
        %v434 = vunpack.c.l.b16 %v352
        %v435 = vunpack.c.h.b16 %v352
        %v436 = vunpack.c.l.b16 %v353
        %v437 = vpack.c.b16 %v416, %v413
        %v438 = vpack.c.b16 %v417, %v414
        %v439 = vpack.c.b16 %v418, %v415
        %v440 = vpack.c.b16 %v422, %v419
        %v441 = vpack.c.b16 %v423, %v420
        %v442 = vpack.c.b16 %v424, %v421
        %v443 = vpack.c.b16 %v428, %v425
        %v444 = vpack.c.b16 %v429, %v426
        %v445 = vpack.c.b16 %v430, %v427
        %v446 = vpack.c.b16 %v434, %v431
        %v447 = vpack.c.b16 %v435, %v432
        %v448 = vpack.c.b16 %v436, %v433
        %v493 = vunpack.c.l.b16 %v354
        %v494 = vunpack.c.l.b16 %v355
        %v495 = vunpack.c.l.b16 %v356
        %v496 = vunpack.c.l.b16 %v357
        %v497 = vunpack.c.l.b16 %v358
        %v498 = vunpack.c.l.b16 %v359
        %v499 = vunpack.c.l.b16 %v360
        %v500 = vunpack.c.l.b16 %v361
        %v501 = vunpack.c.l.b16 %v362
        %v502 = vunpack.c.l.b16 %v363
        %v503 = vunpack.c.l.b16 %v364
        %v504 = vunpack.c.l.b16 %v365
        %v505 = vunpack.c.l.b16 %v366
        %v506 = vunpack.c.l.b16 %v367
        %v507 = vunpack.c.l.b16 %v368
        %v508 = vunpack.c.l.b16 %v369
        %v509 = vunpack.c.l.b16 %v370
        %v510 = vunpack.c.l.b16 %v371
        %v511 = vunpack.c.l.b16 %v372
        %v512 = vunpack.c.l.b16 %v373
        %v513 = vunpack.c.l.b16 %v374
        %v514 = vunpack.c.l.b16 %v375
        %v515 = vunpack.c.l.b16 %v376
        %v516 = vunpack.c.l.b16 %v377
        %v517 = vunpack.c.l.b16 %v378
        %v518 = vunpack.c.l.b16 %v379
        %v519 = vunpack.c.l.b16 %v380
        %v520 = vunpack.c.l.b16 %v381
        %v521 = vunpack.c.l.b16 %v382
        %v522 = vunpack.c.l.b16 %v383
        %v523 = vunpack.c.l.b16 %v384
        %v524 = vunpack.c.l.b16 %v385
        %v525 = vunpack.c.l.b16 %v386
        %v526 = vunpack.c.l.b16 %v387
        %v527 = vunpack.c.l.b16 %v388
        %v528 = vunpack.c.l.b16 %v389
        %v529 = vpack.c.b16 %v494, %v493
        %v530 = vpack.c.b16 %v496, %v495
        %v531 = vpack.c.b16 %v498, %v497
        %v532 = vpack.c.b16 %v500, %v499
        %v533 = vpack.c.b16 %v502, %v501
        %v534 = vpack.c.b16 %v504, %v503
        %v535 = vpack.c.b16 %v506, %v505
        %v536 = vpack.c.b16 %v508, %v507
        %v537 = vpack.c.b16 %v510, %v509
        %v538 = vpack.c.b16 %v512, %v511
        %v539 = vpack.c.b16 %v514, %v513
        %v540 = vpack.c.b16 %v516, %v515
        %v541 = vpack.c.b16 %v518, %v517
        %v542 = vpack.c.b16 %v520, %v519
        %v543 = vpack.c.b16 %v522, %v521
        %v544 = vpack.c.b16 %v524, %v523
        %v545 = vpack.c.b16 %v526, %v525
        %v546 = vpack.c.b16 %v528, %v527
        %vm565 = vcmask 261120
        %v567 = vsel %vm565, %v439, 0
        %v570 = vsel %vm565, %v442, 0
        %v573 = vsel %vm565, %v445, 0
        %v576 = vsel %vm565, %v448, 0
        %578 = vmatprep.subr.bf16.mxu0 0
        %579 = vmatpush1.bf16.msra.mxu0 %v536
        %580 = vmatprep.subr.bf16.mxu0 0
        %581 = vmatpush1.bf16.msra.mxu0 %v535
        %582 = vmatprep.subr.bf16.mxu0 0
        %583 = vmatpush1.bf16.msra.mxu0 %v534
        %584 = vmatprep.subr.bf16.mxu0 0
        %585 = vmatpush1.bf16.msra.mxu0 %v533
        %586 = vmatprep.subr.bf16.mxu0 0
        %587 = vmatpush1.bf16.msra.mxu0 %v532
        %588 = vmatprep.subr.bf16.mxu0 0
        %589 = vmatpush1.bf16.msra.mxu0 %v531
        %590 = vmatprep.subr.bf16.mxu0 0
        %591 = vmatpush1.bf16.msra.mxu0 %v530
        %592 = vmatprep.subr.bf16.mxu0 0
        %593 = vmatpush1.bf16.msra.mxu0 %v529
        %594 = vmatprep.subr.bf16.mxu0 0
        %595 = vmatpush2.bf16.msra.mxu0 %v544
        %596 = vmatprep.subr.bf16.mxu0 0
        %597 = vmatpush2.bf16.msra.mxu0 %v543
        %598 = vmatprep.subr.bf16.mxu0 0
        %599 = vmatpush2.bf16.msra.mxu0 %v542
        %600 = vmatprep.subr.bf16.mxu0 0
        %601 = vmatpush2.bf16.msra.mxu0 %v541
        %602 = vmatprep.subr.bf16.mxu0 0
        %603 = vmatpush2.bf16.msra.mxu0 %v540
        %604 = vmatprep.subr.bf16.mxu0 0
        %605 = vmatpush2.bf16.msra.mxu0 %v539
        %606 = vmatprep.subr.bf16.mxu0 0
        %607 = vmatpush2.bf16.msra.mxu0 %v538
        %608 = vmatprep.subr.bf16.mxu0 0
        %609 = vmatpush2.bf16.msra.mxu0 %v537
        %610 = vmatprep.mubr.bf16.mxu0 %v438
        %611 = vmatmul.mubr.bf16.gmra.mxu0 %v437
        %v612 = vpop.f32.mrf.mxu0
        %v613 = vadd.f32 %v395, %v612
        %v614 = vpop.f32.mrf.mxu0
        %v615 = vpop.f32.mrf.mxu0
        %v616 = vadd.f32 %v395, %v615
        %v617 = vpop.f32.mrf.mxu0
        %618 = vmatprep.mubr.bf16.mxu0 %v441
        %619 = vmatmul.mubr.bf16.gmra.mxu0 %v440
        %v620 = vpop.f32.mrf.mxu0
        %v621 = vadd.f32 %v395, %v620
        %v622 = vpop.f32.mrf.mxu0
        %v623 = vpop.f32.mrf.mxu0
        %v624 = vadd.f32 %v395, %v623
        %v625 = vpop.f32.mrf.mxu0
        %626 = vmatprep.mubr.bf16.mxu0 %v444
        %627 = vmatmul.mubr.bf16.gmra.mxu0 %v443
        %v628 = vpop.f32.mrf.mxu0
        %v629 = vadd.f32 %v395, %v628
        %v630 = vpop.f32.mrf.mxu0
        %v631 = vpop.f32.mrf.mxu0
        %v632 = vadd.f32 %v395, %v631
        %v633 = vpop.f32.mrf.mxu0
        %634 = vmatprep.mubr.bf16.mxu0 %v447
        %635 = vmatmul.mubr.bf16.gmra.mxu0 %v446
        %v636 = vpop.f32.mrf.mxu0
        %v637 = vadd.f32 %v395, %v636
        %v638 = vpop.f32.mrf.mxu0
        %v639 = vpop.f32.mrf.mxu0
        %v640 = vadd.f32 %v395, %v639
        %v641 = vpop.f32.mrf.mxu0
        %642 = vdwg.mxu0
        %643 = vmatprep.subr.bf16.mxu0 0
        %644 = vmatpush1.bf16.msra.mxu0 0
        %645 = vmatprep.subr.bf16.mxu0 0
        %646 = vmatpush1.bf16.msra.mxu0 0
        %647 = vmatprep.subr.bf16.mxu0 0
        %648 = vmatpush1.bf16.msra.mxu0 0
        %649 = vmatprep.subr.bf16.mxu0 0
        %650 = vmatpush1.bf16.msra.mxu0 0
        %651 = vmatprep.subr.bf16.mxu0 0
        %652 = vmatpush1.bf16.msra.mxu0 0
        %653 = vmatprep.subr.bf16.mxu0 0
        %654 = vmatpush1.bf16.msra.mxu0 0
        %655 = vmatprep.subr.bf16.mxu0 0
        %656 = vmatpush1.bf16.msra.mxu0 %v546
        %657 = vmatprep.subr.bf16.mxu0 0
        %658 = vmatpush1.bf16.msra.mxu0 %v545
        %659 = vmatprep.subr.bf16.mxu0 0
        %660 = vmatpush2.bf16.msra.mxu0 0
        %661 = vmatprep.subr.bf16.mxu0 0
        %662 = vmatpush2.bf16.msra.mxu0 0
        %663 = vmatprep.subr.bf16.mxu0 0
        %664 = vmatpush2.bf16.msra.mxu0 0
        %665 = vmatprep.subr.bf16.mxu0 0
        %666 = vmatpush2.bf16.msra.mxu0 0
        %667 = vmatprep.subr.bf16.mxu0 0
        %668 = vmatpush2.bf16.msra.mxu0 0
        %669 = vmatprep.subr.bf16.mxu0 0
        %670 = vmatpush2.bf16.msra.mxu0 0
        %671 = vmatprep.subr.bf16.mxu0 0
        %672 = vmatpush2.bf16.msra.mxu0 0
        %673 = vmatprep.subr.bf16.mxu0 0
        %674 = vmatpush2.bf16.msra.mxu0 0
        %675 = vmatprep.mubr.bf16.mxu0 0
        %676 = vmatmul.mubr.bf16.gmra.mxu0 %v567
        %v677 = vpop.f32.mrf.mxu0
        %v678 = vadd.f32 %v613, %v677
        %v679 = vpop.f32.mrf.mxu0
        %v680 = vpop.f32.mrf.mxu0
        %v681 = vadd.f32 %v616, %v680
        %v682 = vpop.f32.mrf.mxu0
        %683 = vmatprep.mubr.bf16.mxu0 0
        %684 = vmatmul.mubr.bf16.gmra.mxu0 %v570
        %v685 = vpop.f32.mrf.mxu0
        %v686 = vadd.f32 %v621, %v685
        %v687 = vpop.f32.mrf.mxu0
        %v688 = vpop.f32.mrf.mxu0
        %v689 = vadd.f32 %v624, %v688
        %v690 = vpop.f32.mrf.mxu0
        %691 = vmatprep.mubr.bf16.mxu0 0
        %692 = vmatmul.mubr.bf16.gmra.mxu0 %v573
        %v693 = vpop.f32.mrf.mxu0
        %v694 = vadd.f32 %v629, %v693
        %v695 = vpop.f32.mrf.mxu0
        %v696 = vpop.f32.mrf.mxu0
        %v697 = vadd.f32 %v632, %v696
        %v698 = vpop.f32.mrf.mxu0
        %699 = vmatprep.mubr.bf16.mxu0 0
        %700 = vmatmul.mubr.bf16.gmra.mxu0 %v576
        %v701 = vpop.f32.mrf.mxu0
        %v702 = vadd.f32 %v637, %v701
        %v703 = vpop.f32.mrf.mxu0
        %v704 = vpop.f32.mrf.mxu0
        %v705 = vadd.f32 %v640, %v704
        %v706 = vpop.f32.mrf.mxu0
        %707 = vdwg.mxu0
        %v708 = vmax.f32 %v678, 0.0
        %v709 = vmax.f32 %v681, 0.0
        %v710 = vmax.f32 %v686, 0.0
        %v711 = vmax.f32 %v689, 0.0
        %v712 = vmax.f32 %v694, 0.0
        %v713 = vmax.f32 %v697, 0.0
        %v714 = vmax.f32 %v702, 0.0
        %v715 = vmax.f32 %v705, 0.0
        %v716 = vpack.c.bf16 %v709, %v708
        %v717 = vpack.c.bf16 %v711, %v710
        %v718 = vpack.c.bf16 %v713, %v712
        %v719 = vpack.c.bf16 %v715, %v714
        %v720 = vld [vmem:[%s3] sm:$0xf]
        %v721 = vld [vmem:[%s3 + $0x4] sm:$0xf]
        %v722 = vld [vmem:[%s3 + $0x8] sm:$0xf]
        %v723 = vld [vmem:[%s3 + $0xc] sm:$0xf]
        %v724 = vld [vmem:[%s3 + $0x10] sm:$0xf]
        %v725 = vld [vmem:[%s3 + $0x14] sm:$0xf]
        %v726 = vld [vmem:[%s3 + $0x18] sm:$0xf]
        %v727 = vld [vmem:[%s3 + $0x1c] sm:$0xf]
        %v728 = vld [vmem:[%s3 + $0x20] sm:$0xf]
        %v729 = vld [vmem:[%s3 + $0x24] sm:$0xf]
        %v730 = vld [vmem:[%s3 + $0x28] sm:$0xf]
        %v731 = vld [vmem:[%s3 + $0x2c] sm:$0xf]
        %v732 = vld [vmem:[%s3 + $0x30] sm:$0xf]
        %v733 = vld [vmem:[%s3 + $0x34] sm:$0xf]
        %v734 = vld [vmem:[%s3 + $0x38] sm:$0xf]
        %v735 = vld [vmem:[%s3 + $0x3c] sm:$0xf]
        %v736 = vld [vmem:[%s4] sm:$0x1]
        %v738 = vlaneseq
        %v739 = vshrl.u32 %v738, 7
        %v740 = vsub.s32 0, %v739
        %v741 = vrot.slane %v736, %v740
        %v759 = vunpack.c.l.b16 %v720
        %v760 = vunpack.c.l.b16 %v721
        %v761 = vunpack.c.l.b16 %v722
        %v762 = vunpack.c.l.b16 %v723
        %v763 = vunpack.c.l.b16 %v724
        %v764 = vunpack.c.l.b16 %v725
        %v765 = vunpack.c.l.b16 %v726
        %v766 = vunpack.c.l.b16 %v727
        %v767 = vunpack.c.l.b16 %v728
        %v768 = vunpack.c.l.b16 %v729
        %v769 = vunpack.c.l.b16 %v730
        %v770 = vunpack.c.l.b16 %v731
        %v771 = vunpack.c.l.b16 %v732
        %v772 = vunpack.c.l.b16 %v733
        %v773 = vunpack.c.l.b16 %v734
        %v774 = vunpack.c.l.b16 %v735
        %v775 = vpack.c.b16 %v760, %v759
        %v776 = vpack.c.b16 %v762, %v761
        %v777 = vpack.c.b16 %v764, %v763
        %v778 = vpack.c.b16 %v766, %v765
        %v779 = vpack.c.b16 %v768, %v767
        %v780 = vpack.c.b16 %v770, %v769
        %v781 = vpack.c.b16 %v772, %v771
        %v782 = vpack.c.b16 %v774, %v773
        %791 = vmatprep.subr.bf16.mxu0 0
        %792 = vmatpush1.bf16.msra.mxu0 %v782
        %793 = vmatprep.subr.bf16.mxu0 0
        %794 = vmatpush1.bf16.msra.mxu0 %v781
        %795 = vmatprep.subr.bf16.mxu0 0
        %796 = vmatpush1.bf16.msra.mxu0 %v780
        %797 = vmatprep.subr.bf16.mxu0 0
        %798 = vmatpush1.bf16.msra.mxu0 %v779
        %799 = vmatprep.subr.bf16.mxu0 0
        %800 = vmatpush1.bf16.msra.mxu0 %v778
        %801 = vmatprep.subr.bf16.mxu0 0
        %802 = vmatpush1.bf16.msra.mxu0 %v777
        %803 = vmatprep.subr.bf16.mxu0 0
        %804 = vmatpush1.bf16.msra.mxu0 %v776
        %805 = vmatprep.subr.bf16.mxu0 0
        %806 = vmatpush1.bf16.msra.mxu0 %v775
        %807 = vmatprep.subr.bf16.mxu0 0
        %808 = vmatpush2.bf16.msra.mxu0 0
        %809 = vmatprep.subr.bf16.mxu0 0
        %810 = vmatpush2.bf16.msra.mxu0 0
        %811 = vmatprep.subr.bf16.mxu0 0
        %812 = vmatpush2.bf16.msra.mxu0 0
        %813 = vmatprep.subr.bf16.mxu0 0
        %814 = vmatpush2.bf16.msra.mxu0 0
        %815 = vmatprep.subr.bf16.mxu0 0
        %816 = vmatpush2.bf16.msra.mxu0 0
        %817 = vmatprep.subr.bf16.mxu0 0
        %818 = vmatpush2.bf16.msra.mxu0 0
        %819 = vmatprep.subr.bf16.mxu0 0
        %820 = vmatpush2.bf16.msra.mxu0 0
        %821 = vmatprep.subr.bf16.mxu0 0
        %822 = vmatpush2.bf16.msra.mxu0 0
        %823 = vmatprep.mubr.bf16.mxu0 0
        %824 = vmatmul.mubr.bf16.gmra.mxu0 %v716
        %v825 = vpop.f32.mrf.mxu0
        %v826 = vadd.f32 %v741, %v825
        %v827 = vpop.f32.mrf.mxu0
        %v828 = vpop.f32.mrf.mxu0
        %v829 = vadd.f32 %v741, %v828
        %v830 = vpop.f32.mrf.mxu0
        %831 = vmatprep.mubr.bf16.mxu0 0
        %832 = vmatmul.mubr.bf16.gmra.mxu0 %v717
        %v833 = vpop.f32.mrf.mxu0
        %v834 = vadd.f32 %v741, %v833
        %v835 = vpop.f32.mrf.mxu0
        %v836 = vpop.f32.mrf.mxu0
        %v837 = vadd.f32 %v741, %v836
        %v838 = vpop.f32.mrf.mxu0
        %839 = vmatprep.mubr.bf16.mxu0 0
        %840 = vmatmul.mubr.bf16.gmra.mxu0 %v718
        %v841 = vpop.f32.mrf.mxu0
        %v842 = vadd.f32 %v741, %v841
        %v843 = vpop.f32.mrf.mxu0
        %v844 = vpop.f32.mrf.mxu0
        %v845 = vadd.f32 %v741, %v844
        %v846 = vpop.f32.mrf.mxu0
        %847 = vmatprep.mubr.bf16.mxu0 0
        %848 = vmatmul.mubr.bf16.gmra.mxu0 %v719
        %v849 = vpop.f32.mrf.mxu0
        %v850 = vadd.f32 %v741, %v849
        %v851 = vpop.f32.mrf.mxu0
        %v852 = vpop.f32.mrf.mxu0
        %v853 = vadd.f32 %v741, %v852
        %v854 = vpop.f32.mrf.mxu0
        %855 = vdwg.mxu0
        %v856 = vpack.c.bf16 %v829, %v826
        %v857 = vpack.c.bf16 %v837, %v834
        %v858 = vpack.c.bf16 %v845, %v842
        %v859 = vpack.c.bf16 %v853, %v850
        %v860 = vld [vmem:[%s5] sm:$0xf]
        %v861 = vld [vmem:[%s5 + $0x4] sm:$0xf]
        %v862 = vld [vmem:[%s5 + $0x8] sm:$0xf]
        %v863 = vld [vmem:[%s5 + $0xc] sm:$0xf]
        %v864 = vld [vmem:[%s5 + $0x10] sm:$0xf]
        %v865 = vld [vmem:[%s5 + $0x14] sm:$0xf]
        %v866 = vld [vmem:[%s5 + $0x18] sm:$0xf]
        %v867 = vld [vmem:[%s5 + $0x1c] sm:$0xf]
        %v868 = vld [vmem:[%s5 + $0x20] sm:$0xf]
        %v869 = vld [vmem:[%s5 + $0x24] sm:$0xf]
        %v870 = vld [vmem:[%s5 + $0x28] sm:$0xf]
        %v871 = vld [vmem:[%s5 + $0x2c] sm:$0xf]
        %v872 = vld [vmem:[%s5 + $0x30] sm:$0xf]
        %v873 = vld [vmem:[%s5 + $0x34] sm:$0xf]
        %v874 = vld [vmem:[%s5 + $0x38] sm:$0xf]
        %v875 = vld [vmem:[%s5 + $0x3c] sm:$0xf]
        %v876 = vld [vmem:[%s6] sm:$0x1]
        %v878 = vlaneseq
        %v879 = vshrl.u32 %v878, 7
        %v880 = vsub.s32 0, %v879
        %v881 = vrot.slane %v876, %v880
        %v899 = vunpack.c.l.b16 %v860
        %v900 = vunpack.c.l.b16 %v861
        %v901 = vunpack.c.l.b16 %v862
        %v902 = vunpack.c.l.b16 %v863
        %v903 = vunpack.c.l.b16 %v864
        %v904 = vunpack.c.l.b16 %v865
        %v905 = vunpack.c.l.b16 %v866
        %v906 = vunpack.c.l.b16 %v867
        %v907 = vunpack.c.l.b16 %v868
        %v908 = vunpack.c.l.b16 %v869
        %v909 = vunpack.c.l.b16 %v870
        %v910 = vunpack.c.l.b16 %v871
        %v911 = vunpack.c.l.b16 %v872
        %v912 = vunpack.c.l.b16 %v873
        %v913 = vunpack.c.l.b16 %v874
        %v914 = vunpack.c.l.b16 %v875
        %v915 = vpack.c.b16 %v900, %v899
        %v916 = vpack.c.b16 %v902, %v901
        %v917 = vpack.c.b16 %v904, %v903
        %v918 = vpack.c.b16 %v906, %v905
        %v919 = vpack.c.b16 %v908, %v907
        %v920 = vpack.c.b16 %v910, %v909
        %v921 = vpack.c.b16 %v912, %v911
        %v922 = vpack.c.b16 %v914, %v913
        %931 = vmatprep.subr.bf16.mxu0 0
        %932 = vmatpush1.bf16.msra.mxu0 %v922
        %933 = vmatprep.subr.bf16.mxu0 0
        %934 = vmatpush1.bf16.msra.mxu0 %v921
        %935 = vmatprep.subr.bf16.mxu0 0
        %936 = vmatpush1.bf16.msra.mxu0 %v920
        %937 = vmatprep.subr.bf16.mxu0 0
        %938 = vmatpush1.bf16.msra.mxu0 %v919
        %939 = vmatprep.subr.bf16.mxu0 0
        %940 = vmatpush1.bf16.msra.mxu0 %v918
        %941 = vmatprep.subr.bf16.mxu0 0
        %942 = vmatpush1.bf16.msra.mxu0 %v917
        %943 = vmatprep.subr.bf16.mxu0 0
        %944 = vmatpush1.bf16.msra.mxu0 %v916
        %945 = vmatprep.subr.bf16.mxu0 0
        %946 = vmatpush1.bf16.msra.mxu0 %v915
        %947 = vmatprep.subr.bf16.mxu0 0
        %948 = vmatpush2.bf16.msra.mxu0 0
        %949 = vmatprep.subr.bf16.mxu0 0
        %950 = vmatpush2.bf16.msra.mxu0 0
        %951 = vmatprep.subr.bf16.mxu0 0
        %952 = vmatpush2.bf16.msra.mxu0 0
        %953 = vmatprep.subr.bf16.mxu0 0
        %954 = vmatpush2.bf16.msra.mxu0 0
        %955 = vmatprep.subr.bf16.mxu0 0
        %956 = vmatpush2.bf16.msra.mxu0 0
        %957 = vmatprep.subr.bf16.mxu0 0
        %958 = vmatpush2.bf16.msra.mxu0 0
        %959 = vmatprep.subr.bf16.mxu0 0
        %960 = vmatpush2.bf16.msra.mxu0 0
        %961 = vmatprep.subr.bf16.mxu0 0
        %962 = vmatpush2.bf16.msra.mxu0 0
        %963 = vmatprep.mubr.bf16.mxu0 0
        %964 = vmatmul.mubr.bf16.gmra.mxu0 %v856
        %v965 = vpop.f32.mrf.mxu0
        %v966 = vadd.f32 %v881, %v965
        %v967 = vpop.f32.mrf.mxu0
        %v968 = vpop.f32.mrf.mxu0
        %v969 = vadd.f32 %v881, %v968
        %v970 = vpop.f32.mrf.mxu0
        %971 = vmatprep.mubr.bf16.mxu0 0
        %972 = vmatmul.mubr.bf16.gmra.mxu0 %v857
        %v973 = vpop.f32.mrf.mxu0
        %v974 = vadd.f32 %v881, %v973
        %v975 = vpop.f32.mrf.mxu0
        %v976 = vpop.f32.mrf.mxu0
        %v977 = vadd.f32 %v881, %v976
        %v978 = vpop.f32.mrf.mxu0
        %979 = vmatprep.mubr.bf16.mxu0 0
        %980 = vmatmul.mubr.bf16.gmra.mxu0 %v858
        %v981 = vpop.f32.mrf.mxu0
        %v982 = vadd.f32 %v881, %v981
        %v983 = vpop.f32.mrf.mxu0
        %v984 = vpop.f32.mrf.mxu0
        %v985 = vadd.f32 %v881, %v984
        %v986 = vpop.f32.mrf.mxu0
        %987 = vmatprep.mubr.bf16.mxu0 0
        %988 = vmatmul.mubr.bf16.gmra.mxu0 %v859
        %v989 = vpop.f32.mrf.mxu0
        %v990 = vadd.f32 %v881, %v989
        %v991 = vpop.f32.mrf.mxu0
        %v992 = vpop.f32.mrf.mxu0
        %v993 = vadd.f32 %v881, %v992
        %v994 = vpop.f32.mrf.mxu0
        %995 = vdwg.mxu0
        %v996 = vmax.f32 %v966, 0.0
        %v997 = vmax.f32 %v969, 0.0
        %v998 = vmax.f32 %v974, 0.0
        %v999 = vmax.f32 %v977, 0.0
        %v1000 = vmax.f32 %v982, 0.0
        %v1001 = vmax.f32 %v985, 0.0
        %v1002 = vmax.f32 %v990, 0.0
        %v1003 = vmax.f32 %v993, 0.0
        %v1004 = vpack.c.bf16 %v997, %v996
        %v1005 = vpack.c.bf16 %v999, %v998
        %v1006 = vpack.c.bf16 %v1001, %v1000
        %v1007 = vpack.c.bf16 %v1003, %v1002
        %v1008 = vld [vmem:[%s7] sm:$0xf]
        %v1009 = vld [vmem:[%s7 + $0x4] sm:$0xf]
        %v1010 = vld [vmem:[%s7 + $0x8] sm:$0xf]
        %v1011 = vld [vmem:[%s7 + $0xc] sm:$0xf]
        %v1012 = vld [vmem:[%s7 + $0x10] sm:$0xf]
        %v1013 = vld [vmem:[%s7 + $0x14] sm:$0xf]
        %v1014 = vld [vmem:[%s7 + $0x18] sm:$0xf]
        %v1015 = vld [vmem:[%s7 + $0x1c] sm:$0xf]
        %v1016 = vld [vmem:[%s7 + $0x20] sm:$0xf]
        %v1017 = vld [vmem:[%s7 + $0x24] sm:$0xf]
        %v1018 = vld [vmem:[%s7 + $0x28] sm:$0xf]
        %v1019 = vld [vmem:[%s7 + $0x2c] sm:$0xf]
        %v1020 = vld [vmem:[%s7 + $0x30] sm:$0xf]
        %v1021 = vld [vmem:[%s7 + $0x34] sm:$0xf]
        %v1022 = vld [vmem:[%s7 + $0x38] sm:$0xf]
        %v1023 = vld [vmem:[%s7 + $0x3c] sm:$0xf]
        %v1024 = vld [vmem:[%s8] sm:$0x1]
        %v1026 = vlaneseq
        %v1027 = vshrl.u32 %v1026, 7
        %v1028 = vsub.s32 0, %v1027
        %v1029 = vrot.slane %v1024, %v1028
        %v1047 = vunpack.c.l.b16 %v1008
        %v1048 = vunpack.c.l.b16 %v1009
        %v1049 = vunpack.c.l.b16 %v1010
        %v1050 = vunpack.c.l.b16 %v1011
        %v1051 = vunpack.c.l.b16 %v1012
        %v1052 = vunpack.c.l.b16 %v1013
        %v1053 = vunpack.c.l.b16 %v1014
        %v1054 = vunpack.c.l.b16 %v1015
        %v1055 = vunpack.c.l.b16 %v1016
        %v1056 = vunpack.c.l.b16 %v1017
        %v1057 = vunpack.c.l.b16 %v1018
        %v1058 = vunpack.c.l.b16 %v1019
        %v1059 = vunpack.c.l.b16 %v1020
        %v1060 = vunpack.c.l.b16 %v1021
        %v1061 = vunpack.c.l.b16 %v1022
        %v1062 = vunpack.c.l.b16 %v1023
        %v1063 = vpack.c.b16 %v1048, %v1047
        %v1064 = vpack.c.b16 %v1050, %v1049
        %v1065 = vpack.c.b16 %v1052, %v1051
        %v1066 = vpack.c.b16 %v1054, %v1053
        %v1067 = vpack.c.b16 %v1056, %v1055
        %v1068 = vpack.c.b16 %v1058, %v1057
        %v1069 = vpack.c.b16 %v1060, %v1059
        %v1070 = vpack.c.b16 %v1062, %v1061
        %1079 = vmatprep.subr.bf16.mxu0 0
        %1080 = vmatpush1.bf16.msra.mxu0 %v1070
        %1081 = vmatprep.subr.bf16.mxu0 0
        %1082 = vmatpush1.bf16.msra.mxu0 %v1069
        %1083 = vmatprep.subr.bf16.mxu0 0
        %1084 = vmatpush1.bf16.msra.mxu0 %v1068
        %1085 = vmatprep.subr.bf16.mxu0 0
        %1086 = vmatpush1.bf16.msra.mxu0 %v1067
        %1087 = vmatprep.subr.bf16.mxu0 0
        %1088 = vmatpush1.bf16.msra.mxu0 %v1066
        %1089 = vmatprep.subr.bf16.mxu0 0
        %1090 = vmatpush1.bf16.msra.mxu0 %v1065
        %1091 = vmatprep.subr.bf16.mxu0 0
        %1092 = vmatpush1.bf16.msra.mxu0 %v1064
        %1093 = vmatprep.subr.bf16.mxu0 0
        %1094 = vmatpush1.bf16.msra.mxu0 %v1063
        %1095 = vmatprep.subr.bf16.mxu0 0
        %1096 = vmatpush2.bf16.msra.mxu0 0
        %1097 = vmatprep.subr.bf16.mxu0 0
        %1098 = vmatpush2.bf16.msra.mxu0 0
        %1099 = vmatprep.subr.bf16.mxu0 0
        %1100 = vmatpush2.bf16.msra.mxu0 0
        %1101 = vmatprep.subr.bf16.mxu0 0
        %1102 = vmatpush2.bf16.msra.mxu0 0
        %1103 = vmatprep.subr.bf16.mxu0 0
        %1104 = vmatpush2.bf16.msra.mxu0 0
        %1105 = vmatprep.subr.bf16.mxu0 0
        %1106 = vmatpush2.bf16.msra.mxu0 0
        %1107 = vmatprep.subr.bf16.mxu0 0
        %1108 = vmatpush2.bf16.msra.mxu0 0
        %1109 = vmatprep.subr.bf16.mxu0 0
        %1110 = vmatpush2.bf16.msra.mxu0 0
        %1111 = vmatprep.mubr.bf16.mxu0 0
        %1112 = vmatmul.mubr.bf16.gmra.mxu0 %v1004
        %v1113 = vpop.f32.mrf.mxu0
        %v1114 = vadd.f32 %v1029, %v1113
        %v1115 = vpop.f32.mrf.mxu0
        %v1116 = vpop.f32.mrf.mxu0
        %v1117 = vadd.f32 %v1029, %v1116
        %v1118 = vpop.f32.mrf.mxu0
        %1119 = vmatprep.mubr.bf16.mxu0 0
        %1120 = vmatmul.mubr.bf16.gmra.mxu0 %v1005
        %v1121 = vpop.f32.mrf.mxu0
        %v1122 = vadd.f32 %v1029, %v1121
        %v1123 = vpop.f32.mrf.mxu0
        %v1124 = vpop.f32.mrf.mxu0
        %v1125 = vadd.f32 %v1029, %v1124
        %v1126 = vpop.f32.mrf.mxu0
        %1127 = vmatprep.mubr.bf16.mxu0 0
        %1128 = vmatmul.mubr.bf16.gmra.mxu0 %v1006
        %v1129 = vpop.f32.mrf.mxu0
        %v1130 = vadd.f32 %v1029, %v1129
        %v1131 = vpop.f32.mrf.mxu0
        %v1132 = vpop.f32.mrf.mxu0
        %v1133 = vadd.f32 %v1029, %v1132
        %v1134 = vpop.f32.mrf.mxu0
        %1135 = vmatprep.mubr.bf16.mxu0 0
        %1136 = vmatmul.mubr.bf16.gmra.mxu0 %v1007
        %v1137 = vpop.f32.mrf.mxu0
        %v1138 = vadd.f32 %v1029, %v1137
        %v1139 = vpop.f32.mrf.mxu0
        %v1140 = vpop.f32.mrf.mxu0
        %v1141 = vadd.f32 %v1029, %v1140
        %v1142 = vpop.f32.mrf.mxu0
        %1143 = vdwg.mxu0
        %1144 = vst [vmem:[%s328] sm:$0xff] %v1114
        %1145 = vst [vmem:[%s328 + $0x8] sm:$0xff] %v1117
        %1146 = vst [vmem:[%s328 + $0x10] sm:$0xff] %v1122
        %1147 = vst [vmem:[%s328 + $0x18] sm:$0xff] %v1125
        %1148 = vst [vmem:[%s328 + $0x20] sm:$0xff] %v1130
        %1149 = vst [vmem:[%s328 + $0x28] sm:$0xff] %v1133
        %1150 = vst [vmem:[%s328 + $0x30] sm:$0xff] %v1138
        %1151 = vst [vmem:[%s328 + $0x38] sm:$0xff] %v1141
        %s1152 = sand.u32 %s225, 1
        %s1153 = scalar_lea.sflag [#allocation3], %s1152
        %s1154 = sand.u32 %s225, 1
        %s1155 = smul.addr %s1154, 64
        %s1156 = scalar_lea.vmem [#allocation2], %s1155
        // Predicated region
        $region57: #{tpu_custom_call.1} parent=55 // pred_check
          %p1157 = pneg %p235
        $region58: #{tpu_custom_call.1} parent=55 // pred_check_branch
          %1159 = sbr.rel (%p1157) target = $region60
        $region59: #{tpu_custom_call.1} parent=55 // pred_region
          %s1160 = smul.u32 8, %s23
          %s1162 = ssub.s32 1024, 1024
          %1163 = vsyncadd %s1153, %s1162
          %s1164 = smul.addr %s1160, 128
          %s1165 = scalar_lea.hbm %s9, %s1164
          %s1166 = sshll.u32 %s1156, 4
          %s1167 = int_to_ptr.vmem [resolvable:$true] %s1166
          %1172 = dma.vmem_to_hbm [thread:$0]  %s1167, 1024, %s1165, %s1153, 128, 128, 8
        $region60: #{tpu_custom_call.1} parent=55 // pred_fallthru
          _
      $region56: #{tpu_custom_call.1} parent=5 // pred_fallthru
        _
      %p1173 = scmp.le.s32.totalorder 2, %s18
      // Predicated region
      $region61: #{tpu_custom_call.1} parent=5 // pred_check
        %p1174 = pneg %p1173
      $region62: #{tpu_custom_call.1} parent=5 // pred_check_branch
        %1176 = sbr.rel (%p1174) target = $region64
      $region63: #{tpu_custom_call.1} parent=5 // pred_region
        %s1177 = ssub.s32 %s18, 2
        // Predicated region
        $region65: #{tpu_custom_call.1} parent=63 // pred_check
          %p1178 = pneg %p241
        $region66: #{tpu_custom_call.1} parent=63 // pred_check_branch
          %1180 = sbr.rel (%p1178) target = $region68
        $region67: #{tpu_custom_call.1} parent=63 // pred_region
          %s1181 = sand.u32 %s226, 1
          %s1182 = scalar_lea.sflag [#allocation3], %s1181
          %s1183 = sand.u32 %s226, 1
          %s1184 = smul.addr %s1183, 64
          %s1185 = scalar_lea.vmem [#allocation2], %s1184
          %1186 = dma.done %s1182, 1024
        $region68: #{tpu_custom_call.1} parent=63 // pred_fallthru
          _
      $region64: #{tpu_custom_call.1} parent=5 // pred_fallthru
        _
    $region6: #{tpu_custom_call.1} parent=1 // loop_footer
      %s22 = sadd.s32 1, %s18
    $region7: #{tpu_custom_call.1} parent=1 // loop_footer_branch
      %17 = sbr.rel target = $region3
    $region8: #{tpu_custom_call.1} parent=1 // loop_exit
      _
    %1187 = vsyncpa [#allocation3], 1
    %s1188 = scalar_lea.sflag [#allocation3], 1
    %1189 = vsyncpa %s1188, 1

</llo_original>
